<compile_context>
chip_gen: v7x
topology: tpu7x:2x2x1
jax: 0.10.0
libtpu: 0.0.40
codegen_flags: <defaults>
</compile_context>

<pallas_src>
import functools

import numpy as np
import jax
import jax.numpy as jnp
from jax import lax
from jax.experimental import pallas as pl
from jax.experimental.pallas import tpu as pltpu

CLAMP = 2.0        # affine_clamping in nf_fast_flow
LN_EPS = 1e-5      # nn.LayerNorm default eps


# ----------------------------------------------------------------------------
# Pallas kernel.  Grid = (batch, flow_step).  Per grid point: one coupling
# block (conv -> ReLU -> conv subnet via roll+im2col matmuls, affine coupling,
# fused global-affine+permutation).  LayerNorm at step 0, loss / anomaly-map
# reductions at the last step.  Flow state + log-det live in VMEM scratch.
# ----------------------------------------------------------------------------
def _fastflow_kernel(x_ref, lnw_ref, lnb_ref, mask_ref,
                     w1_ref, b1_ref, w2_ref, b2_ref,
                     pa_ref, pb_ref, pbias_ref,
                     z_ref, term_ref, amap_ref,
                     state_ref, logdet_ref,
                     *, c1, c2, img_w, perm_logdet_const):
    f32 = jnp.float32
    s = pl.program_id(1)
    last = pl.num_programs(1) - 1
    P = state_ref.shape[1]

    # ---- step 0: LayerNorm([C,H,W]) with elementwise affine, init log-det ----
    @pl.when(s == 0)
    def _():
        x = x_ref[0].astype(f32)                               # (C, P)
        mu = jnp.mean(x)
        var = jnp.mean((x - mu) * (x - mu))
        xn = (x - mu) * lax.rsqrt(var + LN_EPS)
        state_ref[...] = xn * lnw_ref[...] + lnb_ref[...]
        logdet_ref[...] = jnp.full((1, 1), perm_logdet_const, f32)

    state = state_ref[...]                                     # (C, P)
    x1 = state[:c1, :]                                         # (C1, P)
    x2 = state[c1:, :]                                         # (C2, P)

    # im2col: stack the 9 shifted copies (rolls on the lane axis + boundary
    # masks) so each conv is a single MXU matmul with contraction dim 9*Cin.
    def stack_taps(v):
        pieces = []
        for t in range(9):
            dy, dx = t // 3 - 1, t % 3 - 1
            off = dy * img_w + dx
            if off == 0:
                pieces.append(v)                               # center tap
            else:
                shifted = pltpu.roll(v, shift=(-off) % P, axis=1)
                pieces.append(shifted * mask_ref[t:t + 1, :])
        return jnp.concatenate(pieces, axis=0)                 # (9*Cin, P)

    # subnet: conv(k,'same') -> ReLU -> conv(k,'same')  (0.1 baked into w2/b2)
    h = jnp.dot(w1_ref[0], stack_taps(x1), preferred_element_type=f32) + b1_ref[0]
    h = jnp.maximum(h, 0.0)                                    # (Hd, P)
    a = jnp.dot(w2_ref[0], stack_taps(h), preferred_element_type=f32) + b2_ref[0]

    sj = CLAMP * jnp.tanh(a[:c2, :])
    tj = a[c2:, :]
    x2n = x2 * jnp.exp(sj) + tj                                # affine coupling
    logdet_ref[...] = logdet_ref[...] + jnp.sum(sj)

    # global affine folded into the permutation:  perm@((x*gs)+go)
    state_ref[...] = (jnp.dot(pa_ref[0], x1, preferred_element_type=f32)
                      + jnp.dot(pb_ref[0], x2n, preferred_element_type=f32)
                      + pbias_ref[0])

    # ---- last step: per-sample loss term + small anomaly map ----
    @pl.when(s == last)
    def _():
        z = state_ref[...]
        z_ref[0] = z.astype(z_ref.dtype)
        zz = z * z
        term_ref[...] = ((0.5 * jnp.sum(zz) - logdet_ref[0, 0])
                         * jnp.ones((1, 1, 1), f32))
        amap_ref[0] = -jnp.exp(-0.5 * jnp.mean(zz, axis=0, keepdims=True))


# ----------------------------------------------------------------------------
# Parameter construction (deterministic, mirrors module __init__ shapes)
# ----------------------------------------------------------------------------
def _build_tap_masks(H, W, K=3):
    """mask[t, q] = 1 iff output pixel q has a valid ('same'-padded) input for tap t."""
    P = H * W
    pad = K // 2
    yy, xx = np.meshgrid(np.arange(H), np.arange(W), indexing='ij')
    yy, xx = yy.reshape(-1), xx.reshape(-1)
    masks = np.zeros((K * K, P), np.float32)
    for ky in range(K):
        for kx in range(K):
            dy, dx = ky - pad, kx - pad
            valid = ((yy + dy >= 0) & (yy + dy < H) &
                     (xx + dx >= 0) & (xx + dx < W))
            masks[ky * K + kx] = valid.astype(np.float32)
    return masks


def make_fastflow_params(key, C, H, W, flow_steps, conv3x3_only=False,
                         hidden_ratio=1.0):
    C1 = C - C // 2          # FrEIA AllInOneBlock split
    C2 = C // 2
    Hd = int(C1 * hidden_ratio)
    S = flow_steps
    P = H * W
    keys = jax.random.split(key, 4 * S)

    # kernel-side (folded / im2col) params
    w1f = np.zeros((S, Hd, 9 * C1), np.float32)
    b1 = np.zeros((S, Hd, 1), np.float32)
    w2f = np.zeros((S, 2 * C2, 9 * Hd), np.float32)
    b2f = np.zeros((S, 2 * C2, 1), np.float32)
    pa = np.zeros((S, C, C1), np.float32)
    pb = np.zeros((S, C, C2), np.float32)
    pbias = np.zeros((S, C, 1), np.float32)
    # reference-side (unfolded) params
    w1_oihw = np.zeros((S, Hd, C1, 3, 3), np.float32)
    w2_oihw = np.zeros((S, 2 * C2, Hd, 3, 3), np.float32)
    b1_raw = np.zeros((S, Hd), np.float32)
    b2_raw = np.zeros((S, 2 * C2), np.float32)
    gs = np.zeros((S, C), np.float32)
    go = np.zeros((S, C), np.float32)
    perm = np.zeros((S, C, C), np.float32)
    perm_logdet_const = 0.0

    for s in range(S):
        # original: 1x1 conv on odd steps unless conv3x3_only
        ksz = 1 if (s % 2 == 1 and not conv3x3_only) else 3
        k1, k2, k3, k4 = keys[4 * s:4 * s + 4]
        w1_k = 0.1 * np.asarray(jax.random.normal(k1, (Hd, C1, ksz, ksz)), np.float32)
        w2_k = 0.1 * np.asarray(jax.random.normal(k2, (2 * C2, Hd, ksz, ksz)), np.float32)
        b1_s = 0.05 * np.asarray(jax.random.normal(k3, (Hd,)), np.float32)
        b2_s = 0.05 * np.asarray(jax.random.normal(k4, (2 * C2,)), np.float32)

        # embed 1x1 weights at the center tap of a 3x3 layout (exactly equivalent)
        off = (3 - ksz) // 2
        w1p = np.zeros((Hd, C1, 3, 3), np.float32)
        w1p[:, :, off:off + ksz, off:off + ksz] = w1_k
        w2p = np.zeros((2 * C2, Hd, 3, 3), np.float32)
        w2p[:, :, off:off + ksz, off:off + ksz] = w2_k
        w1_oihw[s], w2_oihw[s] = w1p, w2p
        b1_raw[s], b2_raw[s] = b1_s, b2_s

        # im2col layout matching the kernel's tap stacking: col = t*Cin + c
        w1f[s] = np.transpose(w1p, (0, 2, 3, 1)).reshape(Hd, 9 * C1)
        # FrEIA scales the subnet output by 0.1 -> bake into conv2 weight/bias
        w2f[s] = 0.1 * np.transpose(w2p, (0, 2, 3, 1)).reshape(2 * C2, 9 * Hd)
        b1[s, :, 0] = b1_s
        b2f[s, :, 0] = 0.1 * b2_s

        # AllInOneBlock global affine (SOFTPLUS type, global_affine_init=1.0)
        g_param = 2.0 * np.log(np.exp(0.5 * 10.0 * 1.0) - 1.0)
        scale = 0.1 * 2.0 * np.log1p(np.exp(0.5 * g_param))    # == 1.0 at init
        gs[s, :] = scale
        go[s, :] = 0.0
        perm_logdet_const += (H * W) * C * float(np.log(scale))

        # permute_soft=False -> hard channel permutation: out[idx[j]] = in[j]
        idx = np.random.RandomState(1000 + s).permutation(C)
        pm = np.zeros((C, C), np.float32)
        pm[idx, np.arange(C)] = 1.0
        perm[s] = pm

        # fold global scale/offset into the permutation matmul (split halves
        # so the kernel never concatenates x1/x2)
        pm_scaled = pm * gs[s][None, :]
        pa[s] = pm_scaled[:, :C1]
        pb[s] = pm_scaled[:, C1:]
        pbias[s, :, 0] = pm @ go[s]

    ln_w = np.ones((C, P), np.float32)       # nn.LayerNorm default affine
    ln_b = np.zeros((C, P), np.float32)
    masks = _build_tap_masks(H, W, 3)

    return dict(
        ln_w=jnp.asarray(ln_w), ln_b=jnp.asarray(ln_b), masks=jnp.asarray(masks),
        w1f=jnp.asarray(w1f), b1=jnp.asarray(b1),
        w2f=jnp.asarray(w2f), b2f=jnp.asarray(b2f),
        pa=jnp.asarray(pa), pb=jnp.asarray(pb), pbias=jnp.asarray(pbias),
        # pure-JAX reference params (independent formulation)
        w1_oihw=jnp.asarray(w1_oihw), w2_oihw=jnp.asarray(w2_oihw),
        b1_raw=jnp.asarray(b1_raw), b2_raw=jnp.asarray(b2_raw),
        gs=jnp.asarray(gs), go=jnp.asarray(go), perm=jnp.asarray(perm),
        perm_logdet_const=float(perm_logdet_const),
        C1=C1, C2=C2, Hd=Hd, S=S)


# ----------------------------------------------------------------------------
# Wrapper (glue: flatten spatial, pallas_call, bilinear upsample of the map)
# ----------------------------------------------------------------------------
def fastflow_forward(features, params, input_size):
    B, C, H, W = features.shape
    P = H * W
    S, C1, C2, Hd = params['S'], params['C1'], params['C2'], params['Hd']
    x = features.reshape(B, C, P).astype(jnp.float32)

    kernel = functools.partial(
        _fastflow_kernel, c1=C1, c2=C2, img_w=W,
        perm_logdet_const=params['perm_logdet_const'])

    def resident(shape):
        n = len(shape)
        return pl.BlockSpec(shape, lambda b, s, _n=n: (0,) * _n)

    def per_step(shape):
        return pl.BlockSpec(shape, lambda b, s, _n=len(shape): (s,) + (0,) * (_n - 1))

    z, term, amap = pl.pallas_call(
        kernel,
        grid=(B, S),
        in_specs=[
            pl.BlockSpec((1, C, P), lambda b, s: (b, 0, 0)),       # features
            resident((C, P)), resident((C, P)),                    # LayerNorm affine
            resident((9, P)),                                      # tap validity masks
            per_step((1, Hd, 9 * C1)), per_step((1, Hd, 1)),       # conv1 (im2col) + bias
            per_step((1, 2 * C2, 9 * Hd)), per_step((1, 2 * C2, 1)),  # conv2 + bias (x0.1)
            per_step((1, C, C1)), per_step((1, C, C2)),            # fused affine+perm halves
            per_step((1, C, 1)),                                   # fused permuted offset
        ],
        out_specs=[
            pl.BlockSpec((1, C, P), lambda b, s: (b, 0, 0)),       # flow output z
            pl.BlockSpec((1, 1, 1), lambda b, s: (b, 0, 0)),       # per-sample loss term
            pl.BlockSpec((1, 1, P), lambda b, s: (b, 0, 0)),       # small anomaly map
        ],
        out_shape=[
            jax.ShapeDtypeStruct((B, C, P), jnp.float32),
            jax.ShapeDtypeStruct((B, 1, 1), jnp.float32),
            jax.ShapeDtypeStruct((B, 1, P), jnp.float32),
        ],
        scratch_shapes=[
            pltpu.VMEM((C, P), jnp.float32),    # flow state, carried over steps
            pltpu.VMEM((1, 1), jnp.float32),    # running log-det
        ],
        compiler_params=pltpu.CompilerParams(
            dimension_semantics=("parallel", "arbitrary"),
            vmem_limit_bytes=32 * 1024 * 1024),
    )(x, params['ln_w'], params['ln_b'], params['masks'],
      params['w1f'], params['b1'], params['w2f'], params['b2f'],
      params['pa'], params['pb'], params['pbias'])

    loss = jnp.mean(term[:, 0, 0])
    z = z.reshape(B, C, H, W)
    amap = amap.reshape(B, 1, H, W)
    # F.interpolate(..., mode='bilinear', align_corners=False) equivalent
    anomaly_map = jax.image.resize(
        amap, (B, 1, input_size[0], input_size[1]), method='bilinear')
    return {'loss': loss, 'anomaly_map': anomaly_map, 'flow_output': z}


# ----------------------------------------------------------------------------
# Pure-JAX reference (independent formulation via lax.conv) for validation
# ----------------------------------------------------------------------------
def fastflow_reference(features, params, input_size):
    B, C, H, W = features.shape
    S, C1, C2 = params['S'], params['C1'], params['C2']
    x = features.astype(jnp.float32)
    mu = jnp.mean(x, axis=(1, 2, 3), keepdims=True)
    var = jnp.mean((x - mu) ** 2, axis=(1, 2, 3), keepdims=True)
    state = (x - mu) / jnp.sqrt(var + LN_EPS)
    state = state * params['ln_w'].reshape(1, C, H, W) + params['ln_b'].reshape(1, C, H, W)

    dn = ('NCHW', 'OIHW', 'NCHW')
    logdet = jnp.zeros((B,), jnp.float32)
    for s in range(S):
        x1, x2 = state[:, :C1], state[:, C1:]
        h = lax.conv_general_dilated(x1, params['w1_oihw'][s], (1, 1), 'SAME',
                                     dimension_numbers=dn)
        h = jnp.maximum(h + params['b1_raw'][s].reshape(1, -1, 1, 1), 0.0)
        a = lax.conv_general_dilated(h, params['w2_oihw'][s], (1, 1), 'SAME',
                                     dimension_numbers=dn)
        a = (a + params['b2_raw'][s].reshape(1, -1, 1, 1)) * 0.1
        sj = CLAMP * jnp.tanh(a[:, :C2])
        tj = a[:, C2:]
        x2 = x2 * jnp.exp(sj) + tj
        logdet = logdet + jnp.sum(sj, axis=(1, 2, 3))
        xo = jnp.concatenate([x1, x2], axis=1)
        xo = xo * params['gs'][s].reshape(1, C, 1, 1) + params['go'][s].reshape(1, C, 1, 1)
        state = jnp.einsum('oc,bchw->bohw', params['perm'][s], xo)
    logdet = logdet + params['perm_logdet_const']
    loss = jnp.mean(0.5 * jnp.sum(state ** 2, axis=(1, 2, 3)) - logdet)
    log_prob = -jnp.mean(state ** 2, axis=1, keepdims=True) * 0.5
    amap = jax.image.resize(-jnp.exp(log_prob), (B, 1, input_size[0], input_size[1]),
                            method='bilinear')
    return {'loss': loss, 'anomaly_map': amap, 'flow_output': state}


if __name__ == "__main__":
    B, C, Hf, Wf = 2, 8, 16, 16        # pre-extracted feature map (stand-in backbone)
    flow_steps = 4
    input_size = (32, 32)

    key = jax.random.PRNGKey(0)
    kx, kp = jax.random.split(key)
    feats = jax.random.normal(kx, (B, C, Hf, Wf), jnp.float32)
    params = make_fastflow_params(kp, C, Hf, Wf, flow_steps,
                                  conv3x3_only=False, hidden_ratio=1.0)

    out = fastflow_forward(feats, params, input_size)
    jax.block_until_ready(out)

    ref = fastflow_reference(feats, params, input_size)
    np.testing.assert_allclose(np.asarray(out['loss']), np.asarray(ref['loss']),
                               rtol=2e-3, atol=2e-3)
    np.testing.assert_allclose(np.asarray(out['flow_output']),
                               np.asarray(ref['flow_output']), rtol=2e-3, atol=2e-3)
    np.testing.assert_allclose(np.asarray(out['anomaly_map']),
                               np.asarray(ref['anomaly_map']), rtol=2e-3, atol=2e-3)
    print("KERNEL_OK")
</pallas_src>

<mosaic_0001>
module attributes {stable_mosaic.version = 11 : i64} {
  func.func @_fastflow_kernel(%arg0: i32, %arg1: i32, %arg2: memref<1x8x256xf32, #tpu.memory_space<vmem>>, %arg3: memref<8x256xf32, #tpu.memory_space<vmem>>, %arg4: memref<8x256xf32, #tpu.memory_space<vmem>>, %arg5: memref<9x256xf32, #tpu.memory_space<vmem>>, %arg6: memref<1x4x36xf32, #tpu.memory_space<vmem>>, %arg7: memref<1x4x1xf32, #tpu.memory_space<vmem>>, %arg8: memref<1x8x36xf32, #tpu.memory_space<vmem>>, %arg9: memref<1x8x1xf32, #tpu.memory_space<vmem>>, %arg10: memref<1x8x4xf32, #tpu.memory_space<vmem>>, %arg11: memref<1x8x4xf32, #tpu.memory_space<vmem>>, %arg12: memref<1x8x1xf32, #tpu.memory_space<vmem>>, %arg13: memref<1x8x256xf32, #tpu.memory_space<vmem>>, %arg14: memref<1x1x1xf32, #tpu.memory_space<vmem>>, %arg15: memref<1x1x256xf32, #tpu.memory_space<vmem>>, %arg16: memref<8x256xf32, #tpu.memory_space<vmem>>, %arg17: memref<1x1xf32, #tpu.memory_space<vmem>>) attributes {dimension_semantics = [#tpu.dimension_semantics<parallel>, #tpu.dimension_semantics<arbitrary>], iteration_bounds = array<i64: 2, 4>, scalar_prefetch = 0 : i64, scratch_operands = 2 : i64, tpu.core_type = #tpu.core_type<tc>, window_params = [{transform_indices = @transform_0, window_bounds = array<i64: 1, 8, 256>}, {pipeline_mode = #tpu.pipeline_mode<synchronous>, transform_indices = @transform_1, window_bounds = array<i64: 8, 256>}, {pipeline_mode = #tpu.pipeline_mode<synchronous>, transform_indices = @transform_2, window_bounds = array<i64: 8, 256>}, {pipeline_mode = #tpu.pipeline_mode<synchronous>, transform_indices = @transform_3, window_bounds = array<i64: 9, 256>}, {transform_indices = @transform_4, window_bounds = array<i64: 1, 4, 36>}, {transform_indices = @transform_5, window_bounds = array<i64: 1, 4, 1>}, {transform_indices = @transform_6, window_bounds = array<i64: 1, 8, 36>}, {transform_indices = @transform_7, window_bounds = array<i64: 1, 8, 1>}, {transform_indices = @transform_8, window_bounds = array<i64: 1, 8, 4>}, {transform_indices = @transform_9, window_bounds = array<i64: 1, 8, 4>}, {transform_indices = @transform_10, window_bounds = array<i64: 1, 8, 1>}, {transform_indices = @transform_11, window_bounds = array<i64: 1, 8, 256>}, {transform_indices = @transform_12, window_bounds = array<i64: 1, 1, 1>}, {transform_indices = @transform_13, window_bounds = array<i64: 1, 1, 256>}]} {
    %c0_i32 = arith.constant 0 : i32
    %0 = arith.cmpi eq, %arg1, %c0_i32 : i32
    %1 = arith.extui %0 : i1 to i32
    %c0_i32_0 = arith.constant 0 : i32
    %2 = arith.cmpi ne, %1, %c0_i32_0 : i32
    scf.if %2 {
      %c0_69 = arith.constant 0 : index
      %c0_70 = arith.constant 0 : index
      %c0_71 = arith.constant 0 : index
      %119 = vector.load %arg2[%c0_69, %c0_70, %c0_71] : memref<1x8x256xf32, #tpu.memory_space<vmem>>, vector<1x8x256xf32>
      %120 = vector.shape_cast %119 : vector<1x8x256xf32> to vector<8x256xf32>
      %121 = vector.shape_cast %120 : vector<8x256xf32> to vector<1x8x256xf32>
      %cst_72 = arith.constant dense<0.000000e+00> : vector<1xf32>
      %122 = vector.multi_reduction <add>, %121, %cst_72 [1, 2] : vector<1x8x256xf32> to vector<1xf32>
      %123 = vector.shape_cast %122 : vector<1xf32> to vector<1x1x1xf32>
      %124 = vector.extract %123[0, 0, 0] : f32 from vector<1x1x1xf32>
      %cst_73 = arith.constant 2.048000e+03 : f32
      %125 = arith.divf %124, %cst_73 : f32
      %126 = vector.broadcast %125 : f32 to vector<8x256xf32>
      %127 = arith.subf %120, %126 : vector<8x256xf32>
      %128 = vector.broadcast %125 : f32 to vector<8x256xf32>
      %129 = arith.subf %120, %128 : vector<8x256xf32>
      %130 = arith.mulf %127, %129 : vector<8x256xf32>
      %131 = vector.shape_cast %130 : vector<8x256xf32> to vector<1x8x256xf32>
      %cst_74 = arith.constant dense<0.000000e+00> : vector<1xf32>
      %132 = vector.multi_reduction <add>, %131, %cst_74 [1, 2] : vector<1x8x256xf32> to vector<1xf32>
      %133 = vector.shape_cast %132 : vector<1xf32> to vector<1x1x1xf32>
      %134 = vector.extract %133[0, 0, 0] : f32 from vector<1x1x1xf32>
      %cst_75 = arith.constant 2.048000e+03 : f32
      %135 = arith.divf %134, %cst_75 : f32
      %136 = vector.broadcast %125 : f32 to vector<8x256xf32>
      %137 = arith.subf %120, %136 : vector<8x256xf32>
      %cst_76 = arith.constant 9.99999974E-6 : f32
      %138 = arith.addf %135, %cst_76 : f32
      %139 = math.rsqrt %138 : f32
      %140 = vector.broadcast %139 : f32 to vector<8x256xf32>
      %141 = arith.mulf %137, %140 : vector<8x256xf32>
      %c0_77 = arith.constant 0 : index
      %c0_78 = arith.constant 0 : index
      %142 = vector.load %arg3[%c0_77, %c0_78] : memref<8x256xf32, #tpu.memory_space<vmem>>, vector<8x256xf32>
      %143 = arith.mulf %141, %142 : vector<8x256xf32>
      %c0_79 = arith.constant 0 : index
      %c0_80 = arith.constant 0 : index
      %144 = vector.load %arg4[%c0_79, %c0_80] : memref<8x256xf32, #tpu.memory_space<vmem>>, vector<8x256xf32>
      %145 = arith.addf %143, %144 : vector<8x256xf32>
      %c0_81 = arith.constant 0 : index
      %c0_82 = arith.constant 0 : index
      %146 = vector.load %arg16[%c0_81, %c0_82] : memref<8x256xf32, #tpu.memory_space<vmem>>, vector<8x256xf32>
      tpu.vector_store %arg16[%c0_81, %c0_82], %145 {strides = array<i32>} : memref<8x256xf32, #tpu.memory_space<vmem>>, vector<8x256xf32>,
      %cst_83 = arith.constant 0.000000e+00 : f32
      %147 = vector.broadcast %cst_83 : f32 to vector<1x1xf32>
      %c0_84 = arith.constant 0 : index
      %c0_85 = arith.constant 0 : index
      %148 = vector.load %arg17[%c0_84, %c0_85] : memref<1x1xf32, #tpu.memory_space<vmem>>, vector<1x1xf32>
      tpu.vector_store %arg17[%c0_84, %c0_85], %147 {strides = array<i32>} : memref<1x1xf32, #tpu.memory_space<vmem>>, vector<1x1xf32>,
    } else {
    }
    %c0 = arith.constant 0 : index
    %c0_1 = arith.constant 0 : index
    %3 = vector.load %arg16[%c0, %c0_1] : memref<8x256xf32, #tpu.memory_space<vmem>>, vector<8x256xf32>
    %4 = vector.extract_strided_slice %3 {offsets = [0, 0], sizes = [4, 256], strides = [1, 1]} : vector<8x256xf32> to vector<4x256xf32>
    %5 = vector.extract_strided_slice %3 {offsets = [4, 0], sizes = [4, 256], strides = [1, 1]} : vector<8x256xf32> to vector<4x256xf32>
    %c0_2 = arith.constant 0 : index
    %c0_3 = arith.constant 0 : index
    %c0_4 = arith.constant 0 : index
    %6 = vector.load %arg6[%c0_2, %c0_3, %c0_4] : memref<1x4x36xf32, #tpu.memory_space<vmem>>, vector<1x4x36xf32>
    %7 = vector.shape_cast %6 : vector<1x4x36xf32> to vector<4x36xf32>
    %c17_i32 = arith.constant 17 : i32
    %8 = tpu.dynamic_rotate %4 by %c17_i32 dim 1 : vector<4x256xf32>, i32 -> vector<4x256xf32>
    %c0_5 = arith.constant 0 : index
    %c0_6 = arith.constant 0 : index
    %9 = vector.load %arg5[%c0_5, %c0_6] : memref<9x256xf32, #tpu.memory_space<vmem>>, vector<1x256xf32>
    %10 = vector.broadcast %9 : vector<1x256xf32> to vector<4x256xf32>
    %11 = arith.mulf %8, %10 : vector<4x256xf32>
    %c16_i32 = arith.constant 16 : i32
    %12 = tpu.dynamic_rotate %4 by %c16_i32 dim 1 : vector<4x256xf32>, i32 -> vector<4x256xf32>
    %c1 = arith.constant 1 : index
    %c0_7 = arith.constant 0 : index
    %13 = vector.load %arg5[%c1, %c0_7] : memref<9x256xf32, #tpu.memory_space<vmem>>, vector<1x256xf32>
    %14 = vector.broadcast %13 : vector<1x256xf32> to vector<4x256xf32>
    %15 = arith.mulf %12, %14 : vector<4x256xf32>
    %c15_i32 = arith.constant 15 : i32
    %16 = tpu.dynamic_rotate %4 by %c15_i32 dim 1 : vector<4x256xf32>, i32 -> vector<4x256xf32>
    %c2 = arith.constant 2 : index
    %c0_8 = arith.constant 0 : index
    %17 = vector.load %arg5[%c2, %c0_8] : memref<9x256xf32, #tpu.memory_space<vmem>>, vector<1x256xf32>
    %18 = vector.broadcast %17 : vector<1x256xf32> to vector<4x256xf32>
    %19 = arith.mulf %16, %18 : vector<4x256xf32>
    %c1_i32 = arith.constant 1 : i32
    %20 = tpu.dynamic_rotate %4 by %c1_i32 dim 1 : vector<4x256xf32>, i32 -> vector<4x256xf32>
    %c3 = arith.constant 3 : index
    %c0_9 = arith.constant 0 : index
    %21 = vector.load %arg5[%c3, %c0_9] : memref<9x256xf32, #tpu.memory_space<vmem>>, vector<1x256xf32>
    %22 = vector.broadcast %21 : vector<1x256xf32> to vector<4x256xf32>
    %23 = arith.mulf %20, %22 : vector<4x256xf32>
    %c255_i32 = arith.constant 255 : i32
    %24 = tpu.dynamic_rotate %4 by %c255_i32 dim 1 : vector<4x256xf32>, i32 -> vector<4x256xf32>
    %c5 = arith.constant 5 : index
    %c0_10 = arith.constant 0 : index
    %25 = vector.load %arg5[%c5, %c0_10] : memref<9x256xf32, #tpu.memory_space<vmem>>, vector<1x256xf32>
    %26 = vector.broadcast %25 : vector<1x256xf32> to vector<4x256xf32>
    %27 = arith.mulf %24, %26 : vector<4x256xf32>
    %c241_i32 = arith.constant 241 : i32
    %28 = tpu.dynamic_rotate %4 by %c241_i32 dim 1 : vector<4x256xf32>, i32 -> vector<4x256xf32>
    %c6 = arith.constant 6 : index
    %c0_11 = arith.constant 0 : index
    %29 = vector.load %arg5[%c6, %c0_11] : memref<9x256xf32, #tpu.memory_space<vmem>>, vector<1x256xf32>
    %30 = vector.broadcast %29 : vector<1x256xf32> to vector<4x256xf32>
    %31 = arith.mulf %28, %30 : vector<4x256xf32>
    %c240_i32 = arith.constant 240 : i32
    %32 = tpu.dynamic_rotate %4 by %c240_i32 dim 1 : vector<4x256xf32>, i32 -> vector<4x256xf32>
    %c7 = arith.constant 7 : index
    %c0_12 = arith.constant 0 : index
    %33 = vector.load %arg5[%c7, %c0_12] : memref<9x256xf32, #tpu.memory_space<vmem>>, vector<1x256xf32>
    %34 = vector.broadcast %33 : vector<1x256xf32> to vector<4x256xf32>
    %35 = arith.mulf %32, %34 : vector<4x256xf32>
    %c239_i32 = arith.constant 239 : i32
    %36 = tpu.dynamic_rotate %4 by %c239_i32 dim 1 : vector<4x256xf32>, i32 -> vector<4x256xf32>
    %c8 = arith.constant 8 : index
    %c0_13 = arith.constant 0 : index
    %37 = vector.load %arg5[%c8, %c0_13] : memref<9x256xf32, #tpu.memory_space<vmem>>, vector<1x256xf32>
    %38 = vector.broadcast %37 : vector<1x256xf32> to vector<4x256xf32>
    %39 = arith.mulf %36, %38 : vector<4x256xf32>
    %40 = tpu.concatenate %11, %15, %19, %23, %4, %27, %31, %35, %39 in 0 : vector<4x256xf32>, vector<4x256xf32>, vector<4x256xf32>, vector<4x256xf32>, vector<4x256xf32>, vector<4x256xf32>, vector<4x256xf32>, vector<4x256xf32>, vector<4x256xf32> -> vector<36x256xf32>
    %cst = arith.constant dense<0.000000e+00> : vector<4x256xf32>
    %41 = tpu.matmul %7, %40, %cst {dimension_numbers = #tpu.dot_dimension_numbers<[1], [0], [0], [1], [0, 0, 1, 1], [], []>} : vector<4x36xf32>, vector<36x256xf32>, vector<4x256xf32> -> vector<4x256xf32>
    %c0_14 = arith.constant 0 : index
    %c0_15 = arith.constant 0 : index
    %c0_16 = arith.constant 0 : index
    %42 = vector.load %arg7[%c0_14, %c0_15, %c0_16] : memref<1x4x1xf32, #tpu.memory_space<vmem>>, vector<1x4x1xf32>
    %43 = vector.shape_cast %42 : vector<1x4x1xf32> to vector<4x1xf32>
    %44 = vector.broadcast %43 : vector<4x1xf32> to vector<4x256xf32>
    %45 = arith.addf %41, %44 : vector<4x256xf32>
    %cst_17 = arith.constant 0.000000e+00 : f32
    %46 = vector.broadcast %cst_17 : f32 to vector<4x256xf32>
    %47 = arith.maximumf %45, %46 : vector<4x256xf32>
    %c0_18 = arith.constant 0 : index
    %c0_19 = arith.constant 0 : index
    %c0_20 = arith.constant 0 : index
    %48 = vector.load %arg8[%c0_18, %c0_19, %c0_20] : memref<1x8x36xf32, #tpu.memory_space<vmem>>, vector<1x8x36xf32>
    %49 = vector.shape_cast %48 : vector<1x8x36xf32> to vector<8x36xf32>
    %c17_i32_21 = arith.constant 17 : i32
    %50 = tpu.dynamic_rotate %47 by %c17_i32_21 dim 1 : vector<4x256xf32>, i32 -> vector<4x256xf32>
    %c0_22 = arith.constant 0 : index
    %c0_23 = arith.constant 0 : index
    %51 = vector.load %arg5[%c0_22, %c0_23] : memref<9x256xf32, #tpu.memory_space<vmem>>, vector<1x256xf32>
    %52 = vector.broadcast %51 : vector<1x256xf32> to vector<4x256xf32>
    %53 = arith.mulf %50, %52 : vector<4x256xf32>
    %c16_i32_24 = arith.constant 16 : i32
    %54 = tpu.dynamic_rotate %47 by %c16_i32_24 dim 1 : vector<4x256xf32>, i32 -> vector<4x256xf32>
    %c1_25 = arith.constant 1 : index
    %c0_26 = arith.constant 0 : index
    %55 = vector.load %arg5[%c1_25, %c0_26] : memref<9x256xf32, #tpu.memory_space<vmem>>, vector<1x256xf32>
    %56 = vector.broadcast %55 : vector<1x256xf32> to vector<4x256xf32>
    %57 = arith.mulf %54, %56 : vector<4x256xf32>
    %c15_i32_27 = arith.constant 15 : i32
    %58 = tpu.dynamic_rotate %47 by %c15_i32_27 dim 1 : vector<4x256xf32>, i32 -> vector<4x256xf32>
    %c2_28 = arith.constant 2 : index
    %c0_29 = arith.constant 0 : index
    %59 = vector.load %arg5[%c2_28, %c0_29] : memref<9x256xf32, #tpu.memory_space<vmem>>, vector<1x256xf32>
    %60 = vector.broadcast %59 : vector<1x256xf32> to vector<4x256xf32>
    %61 = arith.mulf %58, %60 : vector<4x256xf32>
    %c1_i32_30 = arith.constant 1 : i32
    %62 = tpu.dynamic_rotate %47 by %c1_i32_30 dim 1 : vector<4x256xf32>, i32 -> vector<4x256xf32>
    %c3_31 = arith.constant 3 : index
    %c0_32 = arith.constant 0 : index
    %63 = vector.load %arg5[%c3_31, %c0_32] : memref<9x256xf32, #tpu.memory_space<vmem>>, vector<1x256xf32>
    %64 = vector.broadcast %63 : vector<1x256xf32> to vector<4x256xf32>
    %65 = arith.mulf %62, %64 : vector<4x256xf32>
    %c255_i32_33 = arith.constant 255 : i32
    %66 = tpu.dynamic_rotate %47 by %c255_i32_33 dim 1 : vector<4x256xf32>, i32 -> vector<4x256xf32>
    %c5_34 = arith.constant 5 : index
    %c0_35 = arith.constant 0 : index
    %67 = vector.load %arg5[%c5_34, %c0_35] : memref<9x256xf32, #tpu.memory_space<vmem>>, vector<1x256xf32>
    %68 = vector.broadcast %67 : vector<1x256xf32> to vector<4x256xf32>
    %69 = arith.mulf %66, %68 : vector<4x256xf32>
    %c241_i32_36 = arith.constant 241 : i32
    %70 = tpu.dynamic_rotate %47 by %c241_i32_36 dim 1 : vector<4x256xf32>, i32 -> vector<4x256xf32>
    %c6_37 = arith.constant 6 : index
    %c0_38 = arith.constant 0 : index
    %71 = vector.load %arg5[%c6_37, %c0_38] : memref<9x256xf32, #tpu.memory_space<vmem>>, vector<1x256xf32>
    %72 = vector.broadcast %71 : vector<1x256xf32> to vector<4x256xf32>
    %73 = arith.mulf %70, %72 : vector<4x256xf32>
    %c240_i32_39 = arith.constant 240 : i32
    %74 = tpu.dynamic_rotate %47 by %c240_i32_39 dim 1 : vector<4x256xf32>, i32 -> vector<4x256xf32>
    %c7_40 = arith.constant 7 : index
    %c0_41 = arith.constant 0 : index
    %75 = vector.load %arg5[%c7_40, %c0_41] : memref<9x256xf32, #tpu.memory_space<vmem>>, vector<1x256xf32>
    %76 = vector.broadcast %75 : vector<1x256xf32> to vector<4x256xf32>
    %77 = arith.mulf %74, %76 : vector<4x256xf32>
    %c239_i32_42 = arith.constant 239 : i32
    %78 = tpu.dynamic_rotate %47 by %c239_i32_42 dim 1 : vector<4x256xf32>, i32 -> vector<4x256xf32>
    %c8_43 = arith.constant 8 : index
    %c0_44 = arith.constant 0 : index
    %79 = vector.load %arg5[%c8_43, %c0_44] : memref<9x256xf32, #tpu.memory_space<vmem>>, vector<1x256xf32>
    %80 = vector.broadcast %79 : vector<1x256xf32> to vector<4x256xf32>
    %81 = arith.mulf %78, %80 : vector<4x256xf32>
    %82 = tpu.concatenate %53, %57, %61, %65, %47, %69, %73, %77, %81 in 0 : vector<4x256xf32>, vector<4x256xf32>, vector<4x256xf32>, vector<4x256xf32>, vector<4x256xf32>, vector<4x256xf32>, vector<4x256xf32>, vector<4x256xf32>, vector<4x256xf32> -> vector<36x256xf32>
    %cst_45 = arith.constant dense<0.000000e+00> : vector<8x256xf32>
    %83 = tpu.matmul %49, %82, %cst_45 {dimension_numbers = #tpu.dot_dimension_numbers<[1], [0], [0], [1], [0, 0, 1, 1], [], []>} : vector<8x36xf32>, vector<36x256xf32>, vector<8x256xf32> -> vector<8x256xf32>
    %c0_46 = arith.constant 0 : index
    %c0_47 = arith.constant 0 : index
    %c0_48 = arith.constant 0 : index
    %84 = vector.load %arg9[%c0_46, %c0_47, %c0_48] : memref<1x8x1xf32, #tpu.memory_space<vmem>>, vector<1x8x1xf32>
    %85 = vector.shape_cast %84 : vector<1x8x1xf32> to vector<8x1xf32>
    %86 = vector.broadcast %85 : vector<8x1xf32> to vector<8x256xf32>
    %87 = arith.addf %83, %86 : vector<8x256xf32>
    %88 = vector.extract_strided_slice %87 {offsets = [0, 0], sizes = [4, 256], strides = [1, 1]} : vector<8x256xf32> to vector<4x256xf32>
    %89 = math.tanh %88 : vector<4x256xf32>
    %cst_49 = arith.constant 2.000000e+00 : f32
    %90 = vector.broadcast %cst_49 : f32 to vector<4x256xf32>
    %91 = arith.mulf %90, %89 : vector<4x256xf32>
    %92 = vector.extract_strided_slice %87 {offsets = [4, 0], sizes = [4, 256], strides = [1, 1]} : vector<8x256xf32> to vector<4x256xf32>
    %93 = math.exp %91 : vector<4x256xf32>
    %94 = arith.mulf %5, %93 : vector<4x256xf32>
    %95 = arith.addf %94, %92 : vector<4x256xf32>
    %c0_50 = arith.constant 0 : index
    %c0_51 = arith.constant 0 : index
    %96 = vector.load %arg17[%c0_50, %c0_51] : memref<1x1xf32, #tpu.memory_space<vmem>>, vector<1x1xf32>
    %97 = vector.shape_cast %91 : vector<4x256xf32> to vector<1x4x256xf32>
    %cst_52 = arith.constant dense<0.000000e+00> : vector<1xf32>
    %98 = vector.multi_reduction <add>, %97, %cst_52 [1, 2] : vector<1x4x256xf32> to vector<1xf32>
    %99 = vector.shape_cast %98 : vector<1xf32> to vector<1x1x1xf32>
    %100 = vector.extract %99[0, 0, 0] : f32 from vector<1x1x1xf32>
    %101 = vector.broadcast %100 : f32 to vector<1x1xf32>
    %102 = arith.addf %96, %101 : vector<1x1xf32>
    %c0_53 = arith.constant 0 : index
    %c0_54 = arith.constant 0 : index
    %103 = vector.load %arg17[%c0_53, %c0_54] : memref<1x1xf32, #tpu.memory_space<vmem>>, vector<1x1xf32>
    tpu.vector_store %arg17[%c0_53, %c0_54], %102 {strides = array<i32>} : memref<1x1xf32, #tpu.memory_space<vmem>>, vector<1x1xf32>,
    %c0_55 = arith.constant 0 : index
    %c0_56 = arith.constant 0 : index
    %c0_57 = arith.constant 0 : index
    %104 = vector.load %arg10[%c0_55, %c0_56, %c0_57] : memref<1x8x4xf32, #tpu.memory_space<vmem>>, vector<1x8x4xf32>
    %105 = vector.shape_cast %104 : vector<1x8x4xf32> to vector<8x4xf32>
    %cst_58 = arith.constant dense<0.000000e+00> : vector<8x256xf32>
    %106 = tpu.matmul %105, %4, %cst_58 {dimension_numbers = #tpu.dot_dimension_numbers<[1], [0], [0], [1], [0, 0, 1, 1], [], []>} : vector<8x4xf32>, vector<4x256xf32>, vector<8x256xf32> -> vector<8x256xf32>
    %c0_59 = arith.constant 0 : index
    %c0_60 = arith.constant 0 : index
    %c0_61 = arith.constant 0 : index
    %107 = vector.load %arg11[%c0_59, %c0_60, %c0_61] : memref<1x8x4xf32, #tpu.memory_space<vmem>>, vector<1x8x4xf32>
    %108 = vector.shape_cast %107 : vector<1x8x4xf32> to vector<8x4xf32>
    %cst_62 = arith.constant dense<0.000000e+00> : vector<8x256xf32>
    %109 = tpu.matmul %108, %95, %cst_62 {dimension_numbers = #tpu.dot_dimension_numbers<[1], [0], [0], [1], [0, 0, 1, 1], [], []>} : vector<8x4xf32>, vector<4x256xf32>, vector<8x256xf32> -> vector<8x256xf32>
    %110 = arith.addf %106, %109 : vector<8x256xf32>
    %c0_63 = arith.constant 0 : index
    %c0_64 = arith.constant 0 : index
    %c0_65 = arith.constant 0 : index
    %111 = vector.load %arg12[%c0_63, %c0_64, %c0_65] : memref<1x8x1xf32, #tpu.memory_space<vmem>>, vector<1x8x1xf32>
    %112 = vector.shape_cast %111 : vector<1x8x1xf32> to vector<8x1xf32>
    %113 = vector.broadcast %112 : vector<8x1xf32> to vector<8x256xf32>
    %114 = arith.addf %110, %113 : vector<8x256xf32>
    %c0_66 = arith.constant 0 : index
    %c0_67 = arith.constant 0 : index
    %115 = vector.load %arg16[%c0_66, %c0_67] : memref<8x256xf32, #tpu.memory_space<vmem>>, vector<8x256xf32>
    tpu.vector_store %arg16[%c0_66, %c0_67], %114 {strides = array<i32>} : memref<8x256xf32, #tpu.memory_space<vmem>>, vector<8x256xf32>,
    %c3_i32 = arith.constant 3 : i32
    %116 = arith.cmpi eq, %arg1, %c3_i32 : i32
    %117 = arith.extui %116 : i1 to i32
    %c0_i32_68 = arith.constant 0 : i32
    %118 = arith.cmpi ne, %117, %c0_i32_68 : i32
    scf.if %118 {
      %c0_69 = arith.constant 0 : index
      %c0_70 = arith.constant 0 : index
      %119 = vector.load %arg16[%c0_69, %c0_70] : memref<8x256xf32, #tpu.memory_space<vmem>>, vector<8x256xf32>
      %c0_71 = arith.constant 0 : index
      %c0_72 = arith.constant 0 : index
      %c0_73 = arith.constant 0 : index
      %120 = vector.load %arg13[%c0_71, %c0_72, %c0_73] : memref<1x8x256xf32, #tpu.memory_space<vmem>>, vector<1x8x256xf32>
      %121 = vector.shape_cast %120 : vector<1x8x256xf32> to vector<8x256xf32>
      %122 = vector.shape_cast %119 : vector<8x256xf32> to vector<1x8x256xf32>
      tpu.vector_store %arg13[%c0_71, %c0_72, %c0_73], %122 {strides = array<i32>} : memref<1x8x256xf32, #tpu.memory_space<vmem>>, vector<1x8x256xf32>,
      %123 = arith.mulf %119, %119 : vector<8x256xf32>
      %124 = vector.shape_cast %123 : vector<8x256xf32> to vector<1x8x256xf32>
      %cst_74 = arith.constant dense<0.000000e+00> : vector<1xf32>
      %125 = vector.multi_reduction <add>, %124, %cst_74 [1, 2] : vector<1x8x256xf32> to vector<1xf32>
      %126 = vector.shape_cast %125 : vector<1xf32> to vector<1x1x1xf32>
      %127 = vector.extract %126[0, 0, 0] : f32 from vector<1x1x1xf32>
      %cst_75 = arith.constant 5.000000e-01 : f32
      %128 = arith.mulf %cst_75, %127 : f32
      %c0_76 = arith.constant 0 : index
      %c0_77 = arith.constant 0 : index
      %129 = vector.load %arg17[%c0_76, %c0_77] : memref<1x1xf32, #tpu.memory_space<vmem>>, vector<1x1xf32>
      %130 = vector.extract %129[0, 0] : f32 from vector<1x1xf32>
      %131 = arith.subf %128, %130 : f32
      %cst_78 = arith.constant 1.000000e+00 : f32
      %132 = vector.broadcast %cst_78 : f32 to vector<1x1x1xf32>
      %133 = vector.broadcast %131 : f32 to vector<1x1x1xf32>
      %134 = arith.mulf %133, %132 : vector<1x1x1xf32>
      %c0_79 = arith.constant 0 : index
      %c0_80 = arith.constant 0 : index
      %c0_81 = arith.constant 0 : index
      %135 = vector.load %arg14[%c0_79, %c0_80, %c0_81] : memref<1x1x1xf32, #tpu.memory_space<vmem>>, vector<1x1x1xf32>
      tpu.vector_store %arg14[%c0_79, %c0_80, %c0_81], %134 {strides = array<i32>} : memref<1x1x1xf32, #tpu.memory_space<vmem>>, vector<1x1x1xf32>,
      %cst_82 = arith.constant dense<0.000000e+00> : vector<256xf32>
      %136 = vector.multi_reduction <add>, %123, %cst_82 [0] : vector<8x256xf32> to vector<256xf32>
      %137 = vector.shape_cast %136 : vector<256xf32> to vector<1x256xf32>
      %cst_83 = arith.constant 8.000000e+00 : f32
      %138 = vector.broadcast %cst_83 : f32 to vector<1x256xf32>
      %139 = arith.divf %137, %138 : vector<1x256xf32>
      %cst_84 = arith.constant -5.000000e-01 : f32
      %140 = vector.broadcast %cst_84 : f32 to vector<1x256xf32>
      %141 = arith.mulf %140, %139 : vector<1x256xf32>
      %142 = math.exp %141 : vector<1x256xf32>
      %cst_85 = arith.constant 0.000000e+00 : f32
      %143 = vector.broadcast %cst_85 : f32 to vector<1x256xf32>
      %144 = arith.subf %143, %142 : vector<1x256xf32>
      %c0_86 = arith.constant 0 : index
      %c0_87 = arith.constant 0 : index
      %c0_88 = arith.constant 0 : index
      %145 = vector.load %arg15[%c0_86, %c0_87, %c0_88] : memref<1x1x256xf32, #tpu.memory_space<vmem>>, vector<1x1x256xf32>
      %146 = vector.shape_cast %145 : vector<1x1x256xf32> to vector<1x256xf32>
      %147 = vector.shape_cast %144 : vector<1x256xf32> to vector<1x1x256xf32>
      tpu.vector_store %arg15[%c0_86, %c0_87, %c0_88], %147 {strides = array<i32>} : memref<1x1x256xf32, #tpu.memory_space<vmem>>, vector<1x1x256xf32>,
    } else {
    }
    return
  }
  func.func @transform_0(%arg0: i32, %arg1: i32) -> (i32, i32, i32) {
    %c0_i32 = arith.constant 0 : i32
    %c0_i32_0 = arith.constant 0 : i32
    %c0_i32_1 = arith.constant 0 : i32
    return %arg0, %c0_i32, %c0_i32_0 : i32, i32, i32
  }
  func.func @transform_1(%arg0: i32, %arg1: i32) -> (i32, i32) {
    %c0_i32 = arith.constant 0 : i32
    %c0_i32_0 = arith.constant 0 : i32
    %c0_i32_1 = arith.constant 0 : i32
    return %c0_i32, %c0_i32_0 : i32, i32
  }
  func.func @transform_2(%arg0: i32, %arg1: i32) -> (i32, i32) {
    %c0_i32 = arith.constant 0 : i32
    %c0_i32_0 = arith.constant 0 : i32
    %c0_i32_1 = arith.constant 0 : i32
    return %c0_i32, %c0_i32_0 : i32, i32
  }
  func.func @transform_3(%arg0: i32, %arg1: i32) -> (i32, i32) {
    %c0_i32 = arith.constant 0 : i32
    %c0_i32_0 = arith.constant 0 : i32
    %c0_i32_1 = arith.constant 0 : i32
    return %c0_i32, %c0_i32_0 : i32, i32
  }
  func.func @transform_4(%arg0: i32, %arg1: i32) -> (i32, i32, i32) {
    %c0_i32 = arith.constant 0 : i32
    %c0_i32_0 = arith.constant 0 : i32
    %c0_i32_1 = arith.constant 0 : i32
    return %arg1, %c0_i32, %c0_i32_0 : i32, i32, i32
  }
  func.func @transform_5(%arg0: i32, %arg1: i32) -> (i32, i32, i32) {
    %c0_i32 = arith.constant 0 : i32
    %c0_i32_0 = arith.constant 0 : i32
    %c0_i32_1 = arith.constant 0 : i32
    return %arg1, %c0_i32, %c0_i32_0 : i32, i32, i32
  }
  func.func @transform_6(%arg0: i32, %arg1: i32) -> (i32, i32, i32) {
    %c0_i32 = arith.constant 0 : i32
    %c0_i32_0 = arith.constant 0 : i32
    %c0_i32_1 = arith.constant 0 : i32
    return %arg1, %c0_i32, %c0_i32_0 : i32, i32, i32
  }
  func.func @transform_7(%arg0: i32, %arg1: i32) -> (i32, i32, i32) {
    %c0_i32 = arith.constant 0 : i32
    %c0_i32_0 = arith.constant 0 : i32
    %c0_i32_1 = arith.constant 0 : i32
    return %arg1, %c0_i32, %c0_i32_0 : i32, i32, i32
  }
  func.func @transform_8(%arg0: i32, %arg1: i32) -> (i32, i32, i32) {
    %c0_i32 = arith.constant 0 : i32
    %c0_i32_0 = arith.constant 0 : i32
    %c0_i32_1 = arith.constant 0 : i32
    return %arg1, %c0_i32, %c0_i32_0 : i32, i32, i32
  }
  func.func @transform_9(%arg0: i32, %arg1: i32) -> (i32, i32, i32) {
    %c0_i32 = arith.constant 0 : i32
    %c0_i32_0 = arith.constant 0 : i32
    %c0_i32_1 = arith.constant 0 : i32
    return %arg1, %c0_i32, %c0_i32_0 : i32, i32, i32
  }
  func.func @transform_10(%arg0: i32, %arg1: i32) -> (i32, i32, i32) {
    %c0_i32 = arith.constant 0 : i32
    %c0_i32_0 = arith.constant 0 : i32
    %c0_i32_1 = arith.constant 0 : i32
    return %arg1, %c0_i32, %c0_i32_0 : i32, i32, i32
  }
  func.func @transform_11(%arg0: i32, %arg1: i32) -> (i32, i32, i32) {
    %c0_i32 = arith.constant 0 : i32
    %c0_i32_0 = arith.constant 0 : i32
    %c0_i32_1 = arith.constant 0 : i32
    return %arg0, %c0_i32, %c0_i32_0 : i32, i32, i32
  }
  func.func @transform_12(%arg0: i32, %arg1: i32) -> (i32, i32, i32) {
    %c0_i32 = arith.constant 0 : i32
    %c0_i32_0 = arith.constant 0 : i32
    %c0_i32_1 = arith.constant 0 : i32
    return %arg0, %c0_i32, %c0_i32_0 : i32, i32, i32
  }
  func.func @transform_13(%arg0: i32, %arg1: i32) -> (i32, i32, i32) {
    %c0_i32 = arith.constant 0 : i32
    %c0_i32_0 = arith.constant 0 : i32
    %c0_i32_1 = arith.constant 0 : i32
    return %arg0, %c0_i32, %c0_i32_0 : i32, i32, i32
  }
}

</mosaic_0001>

<llo_original>
// kernel: tpu_custom_call.1
$region0: #{tpu_custom_call.1}
  #allocation0 [shape = 'u32[]', space=smem, size = 0x4, offset = 0x4, fixed_abs, tag = 'smem constant byte address 0x4 - core index']
  #allocation1 [shape = 'u32[144,128]{1,0:T(1,128)}', space=vmem, size = 0x12000, scoped, tag = 'internal scratch']
  #allocation2 [shape = 'f32[8,256]{1,0:T(8,128)}', space=vmem, size = 0x2000, scoped, tag = 'scratch operand']
  #allocation3 [shape = 'f32[1,1]{1,0:T(1,128)}', space=vmem, size = 0x200, scoped, tag = 'scratch operand']
  %s0 = inlined_call_operand.vmem [shape: f32[2,8,256], index: 0, kind: input, shape index: {}]
  %s1 = inlined_call_operand.vmem [shape: f32[8,256], index: 1, kind: input, shape index: {}]
  %s2 = inlined_call_operand.vmem [shape: f32[8,256], index: 2, kind: input, shape index: {}]
  %s3 = inlined_call_operand.vmem [shape: f32[9,256], index: 3, kind: input, shape index: {}]
  %s4 = inlined_call_operand.vmem [shape: f32[4,4,36], index: 4, kind: input, shape index: {}]
  %s5 = inlined_call_operand.vmem [shape: f32[4,4,1], index: 5, kind: input, shape index: {}]
  %s6 = inlined_call_operand.vmem [shape: f32[4,8,36], index: 6, kind: input, shape index: {}]
  %s7 = inlined_call_operand.vmem [shape: f32[4,8,1], index: 7, kind: input, shape index: {}]
  %s8 = inlined_call_operand.vmem [shape: f32[4,8,4], index: 8, kind: input, shape index: {}]
  %s9 = inlined_call_operand.vmem [shape: f32[4,8,4], index: 9, kind: input, shape index: {}]
  %s10 = inlined_call_operand.vmem [shape: f32[4,8,1], index: 10, kind: input, shape index: {}]
  %s11 = inlined_call_operand.hbm [shape: f32[2,8,256], index: 11, kind: output, shape index: {0}]
  %s12 = inlined_call_operand.vmem [shape: f32[2,1,1], index: 12, kind: output, shape index: {1}]
  %s13 = inlined_call_operand.hbm [shape: f32[2,1,256], index: 13, kind: output, shape index: {2}]
  %14 = xla_tuple %s11, %s12, %s13
  %s15 = sld [smem:[#allocation0]]
  $region101: #{tpu_custom_call.1} parent=0
    _
  %s17 = ssub.s32 1, %s15
  %s18 = scalar_select 0, %s17, %s15
  $region1: #{tpu_custom_call.1} parent=0
    #allocation4 [shape = 'u8[16384]{0}', space=vmem, size = 0x4000, scoped, tag = 'output window, operand 0']
    #allocation5 [shape = 's32[2]{0}', space=sflag, size = 0x8, scoped, tag = 'scoped memory for tpu_custom_call.1']
    #allocation6 [shape = 'u8[2048]{0}', space=vmem, size = 0x800, scoped, tag = 'output window, operand 2']
    #allocation7 [shape = 's32[2]{0}', space=sflag, size = 0x8, scoped, tag = 'scoped memory for tpu_custom_call.1']
    %19 = vsyncpa [#allocation5], 0
    %s20 = scalar_lea.sflag [#allocation5], 1
    %21 = vsyncpa %s20, 0
    %22 = vsyncpa [#allocation7], 0
    %s23 = scalar_lea.sflag [#allocation7], 1
    %24 = vsyncpa %s23, 0
    loop: start=0, step=1, limit=10
    $region2: #{tpu_custom_call.1} parent=1 // loop_pre_header
      _
    $region3: #{tpu_custom_call.1} parent=1 // loop_header
      %s26 = sphi 0, %s30
      %p27 = scmp.ge.s32.totalorder %s26, 10
      %s33 = sphi 0, %s45
      %s34 = sphi 0, %s41
      %s35 = sphi 0, %s33
      %s36 = sphi 0, %s34
      %s37 = sphi 0, %s35
      %s38 = sphi 0, %s36
      %s48 = sphi 0, %s50
      %s51 = sphi 0, %s48
      %s52 = sphi 0, %s51
      %s68 = sphi 0, %s52
      %s72 = sphi 0, %s72
      %s74 = sphi 0, %s72
      %s75 = sphi 0, %s74
      %s89 = sphi 0, %s75
      %s93 = sphi 0, %s93
      %s95 = sphi 0, %s93
      %s96 = sphi 0, %s95
      %s110 = sphi 0, %s96
      %s114 = sphi 0, %s114
      %s116 = sphi 0, %s114
      %s117 = sphi 0, %s116
      %s131 = sphi 0, %s117
      %s137 = sphi 0, %s139
      %s140 = sphi 0, %s137
      %s141 = sphi 0, %s140
      %s157 = sphi 0, %s141
      %s163 = sphi 0, %s165
      %s166 = sphi 0, %s163
      %s167 = sphi 0, %s166
      %s183 = sphi 0, %s167
      %s189 = sphi 0, %s191
      %s192 = sphi 0, %s189
      %s193 = sphi 0, %s192
      %s209 = sphi 0, %s193
      %s215 = sphi 0, %s217
      %s218 = sphi 0, %s215
      %s219 = sphi 0, %s218
      %s235 = sphi 0, %s219
      %s241 = sphi 0, %s243
      %s244 = sphi 0, %s241
      %s245 = sphi 0, %s244
      %s261 = sphi 0, %s245
      %s267 = sphi 0, %s269
      %s270 = sphi 0, %s267
      %s271 = sphi 0, %s270
      %s287 = sphi 0, %s271
      %s293 = sphi 0, %s295
      %s296 = sphi 0, %s293
      %s297 = sphi 0, %s296
      %s313 = sphi 0, %s297
      %s319 = sphi 0, %s321
      %s322 = sphi 0, %s319
      %s323 = sphi 0, %s322
      %s339 = sphi 0, %s323
      %s345 = sphi 0, %s347
      %s348 = sphi 0, %s345
      %s349 = sphi 0, %s348
      %s365 = sphi 0, %s349
      %s371 = sphi 0, %s373
      %s374 = sphi 0, %s371
      %s375 = sphi 0, %s374
      %s391 = sphi 0, %s375
    $region4: #{tpu_custom_call.1} parent=1 // loop_header_branch
      %29 = sbr.rel (%p27) target = $region8
    $region5: #{tpu_custom_call.1} parent=1 // loop_body
      %s31 = ssub.s32 %s26, 1
      %s32 = ssub.s32 %s26, 2
      %s39 = sadd.s32 1, %s34
      %p40 = scmp.ge.s32.totalorder %s39, 4
      %s41 = scalar_select %p40, 0, %s39
      %s42 = sadd.s32 1, %s33
      %s43 = scalar_select %p40, %s42, %s33
      %p44 = scmp.ge.s32.totalorder %s43, 2
      %s45 = scalar_select %p44, 0, %s43
      %s46 = ssub.s32 %s33, %s45
      %p47 = scmp.eq.s32.totalorder %s46, 0
      %s49 = sadd.s32 %s48, 1
      %s50 = scalar_select %p47, %s48, %s49
      %p53 = pneg %p47
      %p54 = scmp.eq.s32.totalorder %s26, 7
      %p55 = por %p53, %p54
      %p56 = scmp.ne.s32.totalorder %s48, %s51
      %p57 = scmp.eq.s32.totalorder %s26, 0
      %p58 = por %p56, %p57
      %p59 = scmp.ne.s32.totalorder %s48, %s51
      %p60 = scmp.eq.s32.totalorder %s31, 7
      %p61 = por %p59, %p60
      %p62 = scmp.ne.s32.totalorder %s51, %s52
      %p63 = scmp.eq.s32.totalorder %s31, 0
      %p64 = por %p62, %p63
      %p65 = scmp.ne.s32.totalorder %s51, %s52
      %p66 = scmp.eq.s32.totalorder %s32, 7
      %p67 = por %p65, %p66
      %p69 = scmp.ne.s32.totalorder %s52, %s68
      %p70 = scmp.eq.s32.totalorder %s32, 0
      %p71 = por %p69, %p70
      %s73 = sadd.s32 %s72, 1
      %p76 = scmp.eq.s32.totalorder %s26, 7
      %p77 = scmp.ne.s32.totalorder %s72, %s74
      %p78 = scmp.eq.s32.totalorder %s26, 0
      %p79 = por %p77, %p78
      %p80 = scmp.ne.s32.totalorder %s72, %s74
      %p81 = scmp.eq.s32.totalorder %s31, 7
      %p82 = por %p80, %p81
      %p83 = scmp.ne.s32.totalorder %s74, %s75
      %p84 = scmp.eq.s32.totalorder %s31, 0
      %p85 = por %p83, %p84
      %p86 = scmp.ne.s32.totalorder %s74, %s75
      %p87 = scmp.eq.s32.totalorder %s32, 7
      %p88 = por %p86, %p87
      %p90 = scmp.ne.s32.totalorder %s75, %s89
      %p91 = scmp.eq.s32.totalorder %s32, 0
      %p92 = por %p90, %p91
      %s94 = sadd.s32 %s93, 1
      %p97 = scmp.eq.s32.totalorder %s26, 7
      %p98 = scmp.ne.s32.totalorder %s93, %s95
      %p99 = scmp.eq.s32.totalorder %s26, 0
      %p100 = por %p98, %p99
      %p101 = scmp.ne.s32.totalorder %s93, %s95
      %p102 = scmp.eq.s32.totalorder %s31, 7
      %p103 = por %p101, %p102
      %p104 = scmp.ne.s32.totalorder %s95, %s96
      %p105 = scmp.eq.s32.totalorder %s31, 0
      %p106 = por %p104, %p105
      %p107 = scmp.ne.s32.totalorder %s95, %s96
      %p108 = scmp.eq.s32.totalorder %s32, 7
      %p109 = por %p107, %p108
      %p111 = scmp.ne.s32.totalorder %s96, %s110
      %p112 = scmp.eq.s32.totalorder %s32, 0
      %p113 = por %p111, %p112
      %s115 = sadd.s32 %s114, 1
      %p118 = scmp.eq.s32.totalorder %s26, 7
      %p119 = scmp.ne.s32.totalorder %s114, %s116
      %p120 = scmp.eq.s32.totalorder %s26, 0
      %p121 = por %p119, %p120
      %p122 = scmp.ne.s32.totalorder %s114, %s116
      %p123 = scmp.eq.s32.totalorder %s31, 7
      %p124 = por %p122, %p123
      %p125 = scmp.ne.s32.totalorder %s116, %s117
      %p126 = scmp.eq.s32.totalorder %s31, 0
      %p127 = por %p125, %p126
      %p128 = scmp.ne.s32.totalorder %s116, %s117
      %p129 = scmp.eq.s32.totalorder %s32, 7
      %p130 = por %p128, %p129
      %p132 = scmp.ne.s32.totalorder %s117, %s131
      %p133 = scmp.eq.s32.totalorder %s32, 0
      %p134 = por %p132, %p133
      %s135 = ssub.s32 %s34, %s41
      %p136 = scmp.eq.s32.totalorder %s135, 0
      %s138 = sadd.s32 %s137, 1
      %s139 = scalar_select %p136, %s137, %s138
      %p142 = pneg %p136
      %p143 = scmp.eq.s32.totalorder %s26, 7
      %p144 = por %p142, %p143
      %p145 = scmp.ne.s32.totalorder %s137, %s140
      %p146 = scmp.eq.s32.totalorder %s26, 0
      %p147 = por %p145, %p146
      %p148 = scmp.ne.s32.totalorder %s137, %s140
      %p149 = scmp.eq.s32.totalorder %s31, 7
      %p150 = por %p148, %p149
      %p151 = scmp.ne.s32.totalorder %s140, %s141
      %p152 = scmp.eq.s32.totalorder %s31, 0
      %p153 = por %p151, %p152
      %p154 = scmp.ne.s32.totalorder %s140, %s141
      %p155 = scmp.eq.s32.totalorder %s32, 7
      %p156 = por %p154, %p155
      %p158 = scmp.ne.s32.totalorder %s141, %s157
      %p159 = scmp.eq.s32.totalorder %s32, 0
      %p160 = por %p158, %p159
      %s161 = ssub.s32 %s34, %s41
      %p162 = scmp.eq.s32.totalorder %s161, 0
      %s164 = sadd.s32 %s163, 1
      %s165 = scalar_select %p162, %s163, %s164
      %p168 = pneg %p162
      %p169 = scmp.eq.s32.totalorder %s26, 7
      %p170 = por %p168, %p169
      %p171 = scmp.ne.s32.totalorder %s163, %s166
      %p172 = scmp.eq.s32.totalorder %s26, 0
      %p173 = por %p171, %p172
      %p174 = scmp.ne.s32.totalorder %s163, %s166
      %p175 = scmp.eq.s32.totalorder %s31, 7
      %p176 = por %p174, %p175
      %p177 = scmp.ne.s32.totalorder %s166, %s167
      %p178 = scmp.eq.s32.totalorder %s31, 0
      %p179 = por %p177, %p178
      %p180 = scmp.ne.s32.totalorder %s166, %s167
      %p181 = scmp.eq.s32.totalorder %s32, 7
      %p182 = por %p180, %p181
      %p184 = scmp.ne.s32.totalorder %s167, %s183
      %p185 = scmp.eq.s32.totalorder %s32, 0
      %p186 = por %p184, %p185
      %s187 = ssub.s32 %s34, %s41
      %p188 = scmp.eq.s32.totalorder %s187, 0
      %s190 = sadd.s32 %s189, 1
      %s191 = scalar_select %p188, %s189, %s190
      %p194 = pneg %p188
      %p195 = scmp.eq.s32.totalorder %s26, 7
      %p196 = por %p194, %p195
      %p197 = scmp.ne.s32.totalorder %s189, %s192
      %p198 = scmp.eq.s32.totalorder %s26, 0
      %p199 = por %p197, %p198
      %p200 = scmp.ne.s32.totalorder %s189, %s192
      %p201 = scmp.eq.s32.totalorder %s31, 7
      %p202 = por %p200, %p201
      %p203 = scmp.ne.s32.totalorder %s192, %s193
      %p204 = scmp.eq.s32.totalorder %s31, 0
      %p205 = por %p203, %p204
      %p206 = scmp.ne.s32.totalorder %s192, %s193
      %p207 = scmp.eq.s32.totalorder %s32, 7
      %p208 = por %p206, %p207
      %p210 = scmp.ne.s32.totalorder %s193, %s209
      %p211 = scmp.eq.s32.totalorder %s32, 0
      %p212 = por %p210, %p211
      %s213 = ssub.s32 %s34, %s41
      %p214 = scmp.eq.s32.totalorder %s213, 0
      %s216 = sadd.s32 %s215, 1
      %s217 = scalar_select %p214, %s215, %s216
      %p220 = pneg %p214
      %p221 = scmp.eq.s32.totalorder %s26, 7
      %p222 = por %p220, %p221
      %p223 = scmp.ne.s32.totalorder %s215, %s218
      %p224 = scmp.eq.s32.totalorder %s26, 0
      %p225 = por %p223, %p224
      %p226 = scmp.ne.s32.totalorder %s215, %s218
      %p227 = scmp.eq.s32.totalorder %s31, 7
      %p228 = por %p226, %p227
      %p229 = scmp.ne.s32.totalorder %s218, %s219
      %p230 = scmp.eq.s32.totalorder %s31, 0
      %p231 = por %p229, %p230
      %p232 = scmp.ne.s32.totalorder %s218, %s219
      %p233 = scmp.eq.s32.totalorder %s32, 7
      %p234 = por %p232, %p233
      %p236 = scmp.ne.s32.totalorder %s219, %s235
      %p237 = scmp.eq.s32.totalorder %s32, 0
      %p238 = por %p236, %p237
      %s239 = ssub.s32 %s34, %s41
      %p240 = scmp.eq.s32.totalorder %s239, 0
      %s242 = sadd.s32 %s241, 1
      %s243 = scalar_select %p240, %s241, %s242
      %p246 = pneg %p240
      %p247 = scmp.eq.s32.totalorder %s26, 7
      %p248 = por %p246, %p247
      %p249 = scmp.ne.s32.totalorder %s241, %s244
      %p250 = scmp.eq.s32.totalorder %s26, 0
      %p251 = por %p249, %p250
      %p252 = scmp.ne.s32.totalorder %s241, %s244
      %p253 = scmp.eq.s32.totalorder %s31, 7
      %p254 = por %p252, %p253
      %p255 = scmp.ne.s32.totalorder %s244, %s245
      %p256 = scmp.eq.s32.totalorder %s31, 0
      %p257 = por %p255, %p256
      %p258 = scmp.ne.s32.totalorder %s244, %s245
      %p259 = scmp.eq.s32.totalorder %s32, 7
      %p260 = por %p258, %p259
      %p262 = scmp.ne.s32.totalorder %s245, %s261
      %p263 = scmp.eq.s32.totalorder %s32, 0
      %p264 = por %p262, %p263
      %s265 = ssub.s32 %s34, %s41
      %p266 = scmp.eq.s32.totalorder %s265, 0
      %s268 = sadd.s32 %s267, 1
      %s269 = scalar_select %p266, %s267, %s268
      %p272 = pneg %p266
      %p273 = scmp.eq.s32.totalorder %s26, 7
      %p274 = por %p272, %p273
      %p275 = scmp.ne.s32.totalorder %s267, %s270
      %p276 = scmp.eq.s32.totalorder %s26, 0
      %p277 = por %p275, %p276
      %p278 = scmp.ne.s32.totalorder %s267, %s270
      %p279 = scmp.eq.s32.totalorder %s31, 7
      %p280 = por %p278, %p279
      %p281 = scmp.ne.s32.totalorder %s270, %s271
      %p282 = scmp.eq.s32.totalorder %s31, 0
      %p283 = por %p281, %p282
      %p284 = scmp.ne.s32.totalorder %s270, %s271
      %p285 = scmp.eq.s32.totalorder %s32, 7
      %p286 = por %p284, %p285
      %p288 = scmp.ne.s32.totalorder %s271, %s287
      %p289 = scmp.eq.s32.totalorder %s32, 0
      %p290 = por %p288, %p289
      %s291 = ssub.s32 %s34, %s41
      %p292 = scmp.eq.s32.totalorder %s291, 0
      %s294 = sadd.s32 %s293, 1
      %s295 = scalar_select %p292, %s293, %s294
      %p298 = pneg %p292
      %p299 = scmp.eq.s32.totalorder %s26, 7
      %p300 = por %p298, %p299
      %p301 = scmp.ne.s32.totalorder %s293, %s296
      %p302 = scmp.eq.s32.totalorder %s26, 0
      %p303 = por %p301, %p302
      %p304 = scmp.ne.s32.totalorder %s293, %s296
      %p305 = scmp.eq.s32.totalorder %s31, 7
      %p306 = por %p304, %p305
      %p307 = scmp.ne.s32.totalorder %s296, %s297
      %p308 = scmp.eq.s32.totalorder %s31, 0
      %p309 = por %p307, %p308
      %p310 = scmp.ne.s32.totalorder %s296, %s297
      %p311 = scmp.eq.s32.totalorder %s32, 7
      %p312 = por %p310, %p311
      %p314 = scmp.ne.s32.totalorder %s297, %s313
      %p315 = scmp.eq.s32.totalorder %s32, 0
      %p316 = por %p314, %p315
      %s317 = ssub.s32 %s33, %s45
      %p318 = scmp.eq.s32.totalorder %s317, 0
      %s320 = sadd.s32 %s319, 1
      %s321 = scalar_select %p318, %s319, %s320
      %p324 = pneg %p318
      %p325 = scmp.eq.s32.totalorder %s26, 7
      %p326 = por %p324, %p325
      %p327 = scmp.ne.s32.totalorder %s319, %s322
      %p328 = scmp.eq.s32.totalorder %s26, 0
      %p329 = por %p327, %p328
      %p330 = scmp.ne.s32.totalorder %s319, %s322
      %p331 = scmp.eq.s32.totalorder %s31, 7
      %p332 = por %p330, %p331
      %p333 = scmp.ne.s32.totalorder %s322, %s323
      %p334 = scmp.eq.s32.totalorder %s31, 0
      %p335 = por %p333, %p334
      %p336 = scmp.ne.s32.totalorder %s322, %s323
      %p337 = scmp.eq.s32.totalorder %s32, 7
      %p338 = por %p336, %p337
      %p340 = scmp.ne.s32.totalorder %s323, %s339
      %p341 = scmp.eq.s32.totalorder %s32, 0
      %p342 = por %p340, %p341
      %s343 = ssub.s32 %s33, %s45
      %p344 = scmp.eq.s32.totalorder %s343, 0
      %s346 = sadd.s32 %s345, 1
      %s347 = scalar_select %p344, %s345, %s346
      %p350 = pneg %p344
      %p351 = scmp.eq.s32.totalorder %s26, 7
      %p352 = por %p350, %p351
      %p353 = scmp.ne.s32.totalorder %s345, %s348
      %p354 = scmp.eq.s32.totalorder %s26, 0
      %p355 = por %p353, %p354
      %p356 = scmp.ne.s32.totalorder %s345, %s348
      %p357 = scmp.eq.s32.totalorder %s31, 7
      %p358 = por %p356, %p357
      %p359 = scmp.ne.s32.totalorder %s348, %s349
      %p360 = scmp.eq.s32.totalorder %s31, 0
      %p361 = por %p359, %p360
      %p362 = scmp.ne.s32.totalorder %s348, %s349
      %p363 = scmp.eq.s32.totalorder %s32, 7
      %p364 = por %p362, %p363
      %p366 = scmp.ne.s32.totalorder %s349, %s365
      %p367 = scmp.eq.s32.totalorder %s32, 0
      %p368 = por %p366, %p367
      %s369 = ssub.s32 %s33, %s45
      %p370 = scmp.eq.s32.totalorder %s369, 0
      %s372 = sadd.s32 %s371, 1
      %s373 = scalar_select %p370, %s371, %s372
      %p376 = pneg %p370
      %p377 = scmp.eq.s32.totalorder %s26, 7
      %p378 = por %p376, %p377
      %p379 = scmp.ne.s32.totalorder %s371, %s374
      %p380 = scmp.eq.s32.totalorder %s26, 0
      %p381 = por %p379, %p380
      %p382 = scmp.ne.s32.totalorder %s371, %s374
      %p383 = scmp.eq.s32.totalorder %s31, 7
      %p384 = por %p382, %p383
      %p385 = scmp.ne.s32.totalorder %s374, %s375
      %p386 = scmp.eq.s32.totalorder %s31, 0
      %p387 = por %p385, %p386
      %p388 = scmp.ne.s32.totalorder %s374, %s375
      %p389 = scmp.eq.s32.totalorder %s32, 7
      %p390 = por %p388, %p389
      %p392 = scmp.ne.s32.totalorder %s375, %s391
      %p393 = scmp.eq.s32.totalorder %s32, 0
      %p394 = por %p392, %p393
      %p395 = scmp.le.s32.totalorder 1, %s26
      %p396 = scmp.lt.s32.totalorder %s26, 9
      %p397 = pnand %p395, %p396
      %p398 = pneg %p397
      // Predicated region
      $region9: #{tpu_custom_call.1} parent=5 // pred_check
        _
      $region10: #{tpu_custom_call.1} parent=5 // pred_check_branch
        %400 = sbr.rel (%p397) target = $region12
      $region11: #{tpu_custom_call.1} parent=5 // pred_region
        %s401 = ssub.s32 %s26, 1
        // Predicated region
        $region13: #{tpu_custom_call.1} parent=11 // pred_check
          %p402 = pneg %p85
        $region14: #{tpu_custom_call.1} parent=11 // pred_check_branch
          %404 = sbr.rel (%p402) target = $region16
        $region15: #{tpu_custom_call.1} parent=11 // pred_region
          _
        $region16: #{tpu_custom_call.1} parent=11 // pred_fallthru
          _
        // Predicated region
        $region17: #{tpu_custom_call.1} parent=11 // pred_check
          %p405 = pneg %p106
        $region18: #{tpu_custom_call.1} parent=11 // pred_check_branch
          %407 = sbr.rel (%p405) target = $region20
        $region19: #{tpu_custom_call.1} parent=11 // pred_region
          _
        $region20: #{tpu_custom_call.1} parent=11 // pred_fallthru
          _
        // Predicated region
        $region21: #{tpu_custom_call.1} parent=11 // pred_check
          %p408 = pneg %p127
        $region22: #{tpu_custom_call.1} parent=11 // pred_check_branch
          %410 = sbr.rel (%p408) target = $region24
        $region23: #{tpu_custom_call.1} parent=11 // pred_region
          _
        $region24: #{tpu_custom_call.1} parent=11 // pred_fallthru
          _
      $region12: #{tpu_custom_call.1} parent=5 // pred_fallthru
        _
      %p411 = scmp.lt.s32.totalorder %s26, 8
      // Predicated region
      $region25: #{tpu_custom_call.1} parent=5 // pred_check
        %p412 = pneg %p411
      $region26: #{tpu_custom_call.1} parent=5 // pred_check_branch
        %414 = sbr.rel (%p412) target = $region28
      $region27: #{tpu_custom_call.1} parent=5 // pred_region
        // Predicated region
        $region29: #{tpu_custom_call.1} parent=27 // pred_check
          %p415 = pneg %p58
        $region30: #{tpu_custom_call.1} parent=27 // pred_check_branch
          %417 = sbr.rel (%p415) target = $region32
        $region31: #{tpu_custom_call.1} parent=27 // pred_region
          %p418 = scmp.lt.s32.totalorder %s33, 1
          %s419 = scalar_select %p418, %s33, 1
          %s420 = smul.addr %s419, 2
          %s421 = smul.addr %s420, 8
          %s422 = scalar_lea.vmem %s0, %s421
        $region32: #{tpu_custom_call.1} parent=27 // pred_fallthru
          _
        // Predicated region
        $region33: #{tpu_custom_call.1} parent=27 // pred_check
          %p423 = pneg %p147
        $region34: #{tpu_custom_call.1} parent=27 // pred_check_branch
          %425 = sbr.rel (%p423) target = $region36
        $region35: #{tpu_custom_call.1} parent=27 // pred_region
          %p426 = scmp.lt.s32.totalorder %s34, 3
          %s427 = scalar_select %p426, %s34, 3
          %s428 = smul.addr %s427, 4
          %s429 = scalar_lea.vmem %s4, %s428
        $region36: #{tpu_custom_call.1} parent=27 // pred_fallthru
          _
        // Predicated region
        $region37: #{tpu_custom_call.1} parent=27 // pred_check
          %p430 = pneg %p173
        $region38: #{tpu_custom_call.1} parent=27 // pred_check_branch
          %432 = sbr.rel (%p430) target = $region40
        $region39: #{tpu_custom_call.1} parent=27 // pred_region
          %p433 = scmp.lt.s32.totalorder %s34, 3
          %s434 = scalar_select %p433, %s34, 3
          %s435 = smul.addr %s434, 4
          %s436 = scalar_lea.vmem %s5, %s435
        $region40: #{tpu_custom_call.1} parent=27 // pred_fallthru
          _
        // Predicated region
        $region41: #{tpu_custom_call.1} parent=27 // pred_check
          %p437 = pneg %p199
        $region42: #{tpu_custom_call.1} parent=27 // pred_check_branch
          %439 = sbr.rel (%p437) target = $region44
        $region43: #{tpu_custom_call.1} parent=27 // pred_region
          %p440 = scmp.lt.s32.totalorder %s34, 3
          %s441 = scalar_select %p440, %s34, 3
          %s442 = smul.addr %s441, 8
          %s443 = scalar_lea.vmem %s6, %s442
        $region44: #{tpu_custom_call.1} parent=27 // pred_fallthru
          _
        // Predicated region
        $region45: #{tpu_custom_call.1} parent=27 // pred_check
          %p444 = pneg %p225
        $region46: #{tpu_custom_call.1} parent=27 // pred_check_branch
          %446 = sbr.rel (%p444) target = $region48
        $region47: #{tpu_custom_call.1} parent=27 // pred_region
          %p447 = scmp.lt.s32.totalorder %s34, 3
          %s448 = scalar_select %p447, %s34, 3
          %s449 = smul.addr %s448, 8
          %s450 = scalar_lea.vmem %s7, %s449
        $region48: #{tpu_custom_call.1} parent=27 // pred_fallthru
          _
        // Predicated region
        $region49: #{tpu_custom_call.1} parent=27 // pred_check
          %p451 = pneg %p251
        $region50: #{tpu_custom_call.1} parent=27 // pred_check_branch
          %453 = sbr.rel (%p451) target = $region52
        $region51: #{tpu_custom_call.1} parent=27 // pred_region
          %p454 = scmp.lt.s32.totalorder %s34, 3
          %s455 = scalar_select %p454, %s34, 3
          %s456 = smul.addr %s455, 8
          %s457 = scalar_lea.vmem %s8, %s456
        $region52: #{tpu_custom_call.1} parent=27 // pred_fallthru
          _
        // Predicated region
        $region53: #{tpu_custom_call.1} parent=27 // pred_check
          %p458 = pneg %p277
        $region54: #{tpu_custom_call.1} parent=27 // pred_check_branch
          %460 = sbr.rel (%p458) target = $region56
        $region55: #{tpu_custom_call.1} parent=27 // pred_region
          %p461 = scmp.lt.s32.totalorder %s34, 3
          %s462 = scalar_select %p461, %s34, 3
          %s463 = smul.addr %s462, 8
          %s464 = scalar_lea.vmem %s9, %s463
        $region56: #{tpu_custom_call.1} parent=27 // pred_fallthru
          _
        // Predicated region
        $region57: #{tpu_custom_call.1} parent=27 // pred_check
          %p465 = pneg %p303
        $region58: #{tpu_custom_call.1} parent=27 // pred_check_branch
          %467 = sbr.rel (%p465) target = $region60
        $region59: #{tpu_custom_call.1} parent=27 // pred_region
          %p468 = scmp.lt.s32.totalorder %s34, 3
          %s469 = scalar_select %p468, %s34, 3
          %s470 = smul.addr %s469, 8
          %s471 = scalar_lea.vmem %s10, %s470
        $region60: #{tpu_custom_call.1} parent=27 // pred_fallthru
          _
      $region28: #{tpu_custom_call.1} parent=5 // pred_fallthru
        _
      %p472 = scmp.le.s32.totalorder 1, %s26
      %p473 = scmp.lt.s32.totalorder %s26, 9
      %p474 = pnand %p472, %p473
      %p475 = pneg %p474
      // Predicated region
      $region61: #{tpu_custom_call.1} parent=5 // pred_check
        _
      $region62: #{tpu_custom_call.1} parent=5 // pred_check_branch
        %477 = sbr.rel (%p474) target = $region64
      $region63: #{tpu_custom_call.1} parent=5 // pred_region
        %s478 = ssub.s32 %s26, 1
        %p479 = scmp.lt.s32.totalorder %s35, 1
        %s480 = scalar_select %p479, %s35, 1
        %s481 = smul.addr %s480, 2
        %s482 = smul.addr %s481, 8
        %s483 = scalar_lea.vmem %s0, %s482
        %p484 = pneg %p64
        %p485 = pneg %p61
        %p486 = pneg %p85
        %p487 = pneg %p82
        %p488 = pneg %p106
        %p489 = pneg %p103
        %p490 = pneg %p127
        %p491 = pneg %p124
        %p492 = scmp.lt.s32.totalorder %s36, 3
        %s493 = scalar_select %p492, %s36, 3
        %s494 = smul.addr %s493, 4
        %s495 = scalar_lea.vmem %s4, %s494
        %p496 = pneg %p153
        %p497 = pneg %p150
        %p498 = scmp.lt.s32.totalorder %s36, 3
        %s499 = scalar_select %p498, %s36, 3
        %s500 = smul.addr %s499, 4
        %s501 = scalar_lea.vmem %s5, %s500
        %p502 = pneg %p179
        %p503 = pneg %p176
        %p504 = scmp.lt.s32.totalorder %s36, 3
        %s505 = scalar_select %p504, %s36, 3
        %s506 = smul.addr %s505, 8
        %s507 = scalar_lea.vmem %s6, %s506
        %p508 = pneg %p205
        %p509 = pneg %p202
        %p510 = scmp.lt.s32.totalorder %s36, 3
        %s511 = scalar_select %p510, %s36, 3
        %s512 = smul.addr %s511, 8
        %s513 = scalar_lea.vmem %s7, %s512
        %p514 = pneg %p231
        %p515 = pneg %p228
        %p516 = scmp.lt.s32.totalorder %s36, 3
        %s517 = scalar_select %p516, %s36, 3
        %s518 = smul.addr %s517, 8
        %s519 = scalar_lea.vmem %s8, %s518
        %p520 = pneg %p257
        %p521 = pneg %p254
        %p522 = scmp.lt.s32.totalorder %s36, 3
        %s523 = scalar_select %p522, %s36, 3
        %s524 = smul.addr %s523, 8
        %s525 = scalar_lea.vmem %s9, %s524
        %p526 = pneg %p283
        %p527 = pneg %p280
        %p528 = scmp.lt.s32.totalorder %s36, 3
        %s529 = scalar_select %p528, %s36, 3
        %s530 = smul.addr %s529, 8
        %s531 = scalar_lea.vmem %s10, %s530
        %p532 = pneg %p309
        %p533 = pneg %p306
        %p534 = pneg %p335
        %p535 = pneg %p332
        %s536 = sand.u32 %s322, 1
        %s537 = scalar_lea.sflag [#allocation5], %s536
        %s538 = sand.u32 %s322, 1
        %s539 = smul.addr %s538, 16
        %s540 = scalar_lea.vmem [#allocation4], %s539
        %p541 = pneg %p361
        %p542 = pneg %p358
        %p543 = scmp.lt.s32.totalorder %s35, 1
        %s544 = scalar_select %p543, %s35, 1
        %s545 = scalar_lea.vmem %s12, %s544
        %p546 = pneg %p387
        %p547 = pneg %p384
        %s548 = sand.u32 %s374, 1
        %s549 = scalar_lea.sflag [#allocation7], %s548
        %s550 = sand.u32 %s374, 1
        %s551 = smul.addr %s550, 2
        %s552 = scalar_lea.vmem [#allocation6], %s551
        %p553 = scmp.lt.s32.totalorder %s35, 1
        %s554 = scalar_select %p553, %s35, 1
        %s555 = smul.addr %s554, 2
        %s556 = smul.addr %s555, 8
        %s557 = scalar_lea.vmem %s0, %s556
        %p558 = scmp.lt.s32.totalorder %s36, 3
        %s559 = scalar_select %p558, %s36, 3
        %s560 = smul.addr %s559, 4
        %s561 = scalar_lea.vmem %s4, %s560
        %p562 = scmp.lt.s32.totalorder %s36, 3
        %s563 = scalar_select %p562, %s36, 3
        %s564 = smul.addr %s563, 4
        %s565 = scalar_lea.vmem %s5, %s564
        %p566 = scmp.lt.s32.totalorder %s36, 3
        %s567 = scalar_select %p566, %s36, 3
        %s568 = smul.addr %s567, 8
        %s569 = scalar_lea.vmem %s6, %s568
        %p570 = scmp.lt.s32.totalorder %s36, 3
        %s571 = scalar_select %p570, %s36, 3
        %s572 = smul.addr %s571, 8
        %s573 = scalar_lea.vmem %s7, %s572
        %p574 = scmp.lt.s32.totalorder %s36, 3
        %s575 = scalar_select %p574, %s36, 3
        %s576 = smul.addr %s575, 8
        %s577 = scalar_lea.vmem %s8, %s576
        %p578 = scmp.lt.s32.totalorder %s36, 3
        %s579 = scalar_select %p578, %s36, 3
        %s580 = smul.addr %s579, 8
        %s581 = scalar_lea.vmem %s9, %s580
        %p582 = scmp.lt.s32.totalorder %s36, 3
        %s583 = scalar_select %p582, %s36, 3
        %s584 = smul.addr %s583, 8
        %s585 = scalar_lea.vmem %s10, %s584
        %p586 = scmp.lt.s32.totalorder %s35, 1
        %s587 = scalar_select %p586, %s35, 1
        %s588 = scalar_lea.vmem %s12, %s587
        %p589 = scmp.eq.s32.totalorder %s36, 0
        // Predicated region
        $region65: #{tpu_custom_call.1} parent=63 // pred_check
          %p590 = pneg %p589
        $region66: #{tpu_custom_call.1} parent=63 // pred_check_branch
          %592 = sbr.rel (%p590) target = $region68
        $region67: #{tpu_custom_call.1} parent=63 // pred_region
          %v593 = vld [vmem:[%s557] sm:$0xff]
          %v594 = vld [vmem:[%s557 + $0x8] sm:$0xff]
          %v595 = vadd.f32 %v593, %v594
          %596 = vadd.xlane.f32.xlu0 %v595
          %v597 = vpop.xlane.xlu0 %596
          %v598 = vrot.slane %v597, 4
          %v599 = vadd.f32 %v597, %v598
          %v600 = vrot.slane %v599, 2
          %v601 = vadd.f32 %v599, %v600
          %v602 = vrot.slane %v601, 1
          %v603 = vadd.f32 %v601, %v602
          %s604 = vtos %v603
          %v605 = vrcp.pop 2048.0
          %s606 = vtos %v605
          %s607 = smul.f32 %s604, %s606
          %v608 = vstv %s607
          %v609 = vsub.f32 %v593, %v608
          %v610 = vsub.f32 %v594, %v608
          %v611 = vmul.f32 %v609, %v609
          %v612 = vmul.f32 %v610, %v610
          %v613 = vadd.f32 %v611, %v612
          %614 = vadd.xlane.f32.xlu0 %v613
          %v615 = vpop.xlane.xlu0 %614
          %v616 = vrot.slane %v615, 4
          %v617 = vadd.f32 %v615, %v616
          %v618 = vrot.slane %v617, 2
          %v619 = vadd.f32 %v617, %v618
          %v620 = vrot.slane %v619, 1
          %v621 = vadd.f32 %v619, %v620
          %s622 = vtos %v621
          %v623 = vrcp.pop 2048.0
          %s624 = vtos %v623
          %s625 = smul.f32 %s622, %s624
          %s626 = sadd.f32 %s625, 1e-05
          %v627 = vstv %s626
          %v628 = vrsqrt.pop %v627
          %s629 = vtos %v628
          %v630 = vstv %s629
          %v631 = vmul.f32 %v609, %v630
          %v632 = vmul.f32 %v610, %v630
          %v633 = vld [vmem:[%s1] sm:$0xff]
          %v634 = vld [vmem:[%s1 + $0x8] sm:$0xff]
          %v635 = vmul.f32 %v631, %v633
          %v636 = vmul.f32 %v632, %v634
          %v637 = vld [vmem:[%s2] sm:$0xff]
          %v638 = vld [vmem:[%s2 + $0x8] sm:$0xff]
          %v639 = vadd.f32 %v635, %v637
          %v640 = vadd.f32 %v636, %v638
          %641 = vst [vmem:[#allocation2] sm:$0xff] %v639
          %642 = vst [vmem:[#allocation2 + $0x8] sm:$0xff] %v640
          %vm643 = vcmask 0
          %644 = vst.msk [vmem:[#allocation3] sm:$0x1] %vm643, 0.0
        $region68: #{tpu_custom_call.1} parent=63 // pred_fallthru
          _
        %v645 = vld [vmem:[#allocation2] sm:$0xff]
        %v646 = vld [vmem:[#allocation2 + $0x8] sm:$0xff]
        %v647 = vld [vmem:[%s561] sm:$0xf]
        %648 = vrot.lane.b32.xlu0 %v645, 17
        %v649 = vpop.permute.xlu0 %648
        %650 = vrot.lane.b32.xlu0 %v646, 17
        %v651 = vpop.permute.xlu0 %650
        %v652 = vlaneseq
        %v653 = vand.u32 %v652, 127
        %vm654 = vcmp.lt.s32.totalorder %v653, 17
        %v655 = vsel %vm654, %v649, %v651
        %v656 = vsel %vm654, %v651, %v649
        %v657 = vld [vmem:[%s3] ss:$8 sm:$0x3]
        %v659 = vlaneseq
        %v660 = vshrl.u32 %v659, 7
        %v661 = vsub.s32 0, %v660
        %v662 = vrot.slane %v657, %v661
        %v663 = vlaneseq
        %v664 = vshrl.u32 %v663, 7
        %v665 = vsub.s32 1, %v664
        %v666 = vrot.slane %v657, %v665
        %v669 = vmul.f32 %v656, %v662
        %v670 = vmul.f32 %v655, %v666
        %671 = vrot.lane.b32.xlu0 %v645, 16
        %v672 = vpop.permute.xlu0 %671
        %673 = vrot.lane.b32.xlu0 %v646, 16
        %v674 = vpop.permute.xlu0 %673
        %vm675 = vcmp.lt.s32.totalorder %v653, 16
        %v676 = vsel %vm675, %v672, %v674
        %v677 = vsel %vm675, %v674, %v672
        %s678 = scalar_lea.vmem %s3, 1
        %v679 = vld [vmem:[%s678] ss:$8 sm:$0x3]
        %v681 = vlaneseq
        %v682 = vshrl.u32 %v681, 7
        %v683 = vsub.s32 0, %v682
        %v684 = vrot.slane %v679, %v683
        %v685 = vlaneseq
        %v686 = vshrl.u32 %v685, 7
        %v687 = vsub.s32 1, %v686
        %v688 = vrot.slane %v679, %v687
        %v691 = vmul.f32 %v677, %v684
        %v692 = vmul.f32 %v676, %v688
        %693 = vrot.lane.b32.xlu0 %v645, 15
        %v694 = vpop.permute.xlu0 %693
        %695 = vrot.lane.b32.xlu0 %v646, 15
        %v696 = vpop.permute.xlu0 %695
        %vm697 = vcmp.lt.s32.totalorder %v653, 15
        %v698 = vsel %vm697, %v694, %v696
        %v699 = vsel %vm697, %v696, %v694
        %s700 = scalar_lea.vmem %s3, 2
        %v701 = vld [vmem:[%s700] ss:$8 sm:$0x3]
        %v703 = vlaneseq
        %v704 = vshrl.u32 %v703, 7
        %v705 = vsub.s32 0, %v704
        %v706 = vrot.slane %v701, %v705
        %v707 = vlaneseq
        %v708 = vshrl.u32 %v707, 7
        %v709 = vsub.s32 1, %v708
        %v710 = vrot.slane %v701, %v709
        %v713 = vmul.f32 %v699, %v706
        %v714 = vmul.f32 %v698, %v710
        %715 = vrot.lane.b32.xlu0 %v645, 1
        %v716 = vpop.permute.xlu0 %715
        %717 = vrot.lane.b32.xlu0 %v646, 1
        %v718 = vpop.permute.xlu0 %717
        %vm719 = vcmp.lt.s32.totalorder %v653, 1
        %v720 = vsel %vm719, %v716, %v718
        %v721 = vsel %vm719, %v718, %v716
        %s722 = scalar_lea.vmem %s3, 3
        %v723 = vld [vmem:[%s722] ss:$8 sm:$0x3]
        %v725 = vlaneseq
        %v726 = vshrl.u32 %v725, 7
        %v727 = vsub.s32 0, %v726
        %v728 = vrot.slane %v723, %v727
        %v729 = vlaneseq
        %v730 = vshrl.u32 %v729, 7
        %v731 = vsub.s32 1, %v730
        %v732 = vrot.slane %v723, %v731
        %v735 = vmul.f32 %v721, %v728
        %v736 = vmul.f32 %v720, %v732
        %737 = vrot.lane.b32.xlu0 %v645, 127
        %v738 = vpop.permute.xlu0 %737
        %739 = vrot.lane.b32.xlu0 %v646, 127
        %v740 = vpop.permute.xlu0 %739
        %vm741 = vcmp.lt.s32.totalorder %v653, 127
        %v742 = vsel %vm741, %v738, %v740
        %v743 = vsel %vm741, %v740, %v738
        %s744 = scalar_lea.vmem %s3, 5
        %v745 = vld [vmem:[%s744] ss:$8 sm:$0x3]
        %v747 = vlaneseq
        %v748 = vshrl.u32 %v747, 7
        %v749 = vsub.s32 0, %v748
        %v750 = vrot.slane %v745, %v749
        %v751 = vlaneseq
        %v752 = vshrl.u32 %v751, 7
        %v753 = vsub.s32 1, %v752
        %v754 = vrot.slane %v745, %v753
        %v757 = vmul.f32 %v742, %v750
        %v758 = vmul.f32 %v743, %v754
        %759 = vrot.lane.b32.xlu0 %v645, 113
        %v760 = vpop.permute.xlu0 %759
        %761 = vrot.lane.b32.xlu0 %v646, 113
        %v762 = vpop.permute.xlu0 %761
        %vm763 = vcmp.lt.s32.totalorder %v653, 113
        %v764 = vsel %vm763, %v760, %v762
        %v765 = vsel %vm763, %v762, %v760
        %s766 = scalar_lea.vmem %s3, 6
        %v767 = vld [vmem:[%s766] ss:$8 sm:$0x3]
        %v769 = vlaneseq
        %v770 = vshrl.u32 %v769, 7
        %v771 = vsub.s32 0, %v770
        %v772 = vrot.slane %v767, %v771
        %v773 = vlaneseq
        %v774 = vshrl.u32 %v773, 7
        %v775 = vsub.s32 1, %v774
        %v776 = vrot.slane %v767, %v775
        %v779 = vmul.f32 %v764, %v772
        %v780 = vmul.f32 %v765, %v776
        %781 = vrot.lane.b32.xlu0 %v645, 112
        %v782 = vpop.permute.xlu0 %781
        %783 = vrot.lane.b32.xlu0 %v646, 112
        %v784 = vpop.permute.xlu0 %783
        %vm785 = vcmp.lt.s32.totalorder %v653, 112
        %v786 = vsel %vm785, %v782, %v784
        %v787 = vsel %vm785, %v784, %v782
        %s788 = scalar_lea.vmem %s3, 7
        %v789 = vld [vmem:[%s788] ss:$8 sm:$0x3]
        %v791 = vlaneseq
        %v792 = vshrl.u32 %v791, 7
        %v793 = vsub.s32 0, %v792
        %v794 = vrot.slane %v789, %v793
        %v795 = vlaneseq
        %v796 = vshrl.u32 %v795, 7
        %v797 = vsub.s32 1, %v796
        %v798 = vrot.slane %v789, %v797
        %v801 = vmul.f32 %v786, %v794
        %v802 = vmul.f32 %v787, %v798
        %803 = vrot.lane.b32.xlu0 %v645, 111
        %v804 = vpop.permute.xlu0 %803
        %805 = vrot.lane.b32.xlu0 %v646, 111
        %v806 = vpop.permute.xlu0 %805
        %vm807 = vcmp.lt.s32.totalorder %v653, 111
        %v808 = vsel %vm807, %v804, %v806
        %v809 = vsel %vm807, %v806, %v804
        %s810 = scalar_lea.vmem %s3, 16
        %v811 = vld [vmem:[%s810] ss:$8 sm:$0x3]
        %v813 = vlaneseq
        %v814 = vshrl.u32 %v813, 7
        %v815 = vsub.s32 0, %v814
        %v816 = vrot.slane %v811, %v815
        %v817 = vlaneseq
        %v818 = vshrl.u32 %v817, 7
        %v819 = vsub.s32 1, %v818
        %v820 = vrot.slane %v811, %v819
        %v823 = vmul.f32 %v808, %v816
        %v824 = vmul.f32 %v809, %v820
        %v827 = vrot.slane %v691, 4
        %v828 = vrot.slane %v692, 4
        %v833 = vrot.slane %v735, 4
        %v834 = vrot.slane %v736, 4
        %v839 = vrot.slane %v757, 4
        %v840 = vrot.slane %v758, 4
        %v845 = vrot.slane %v801, 4
        %v846 = vrot.slane %v802, 4
        %vm849 = vcmask 1043456
        %v850 = vsel %vm849, %v669, %v827
        %v851 = vsel %vm849, %v670, %v828
        %v852 = vsel %vm849, %v713, %v833
        %v853 = vsel %vm849, %v714, %v834
        %v854 = vsel %vm849, %v645, %v839
        %v855 = vsel %vm849, %v646, %v840
        %v856 = vsel %vm849, %v779, %v845
        %v857 = vsel %vm849, %v780, %v846
        %v858 = vld [vmem:[%s565] sm:$0xf]
        %860 = vset.pattern.permute.xlu0 0
        %861 = vperm.xlu0 %860, %v858
        %v862 = vpop.permute.xlu0 %861
        %vm864 = vcmask 293888
        %v866 = vsel %vm864, %v647, 0
        %v869 = vsel %vm849, %v823, 0
        %v872 = vsel %vm849, %v824, 0
        %874 = vmatprep.subr.mxu0 %v851
        %875 = vmatpush1.msra.mxu0 %v850
        %876 = vmatprep.subr.mxu0 %v853
        %877 = vmatpush1.msra.mxu0 %v852
        %878 = vmatprep.subr.mxu0 %v855
        %879 = vmatpush1.msra.mxu0 %v854
        %880 = vmatprep.subr.mxu0 %v857
        %881 = vmatpush1.msra.mxu0 %v856
        %882 = vmatprep.subr.mxu0 %v872
        %883 = vmatpush1.msra.mxu0 %v869
        %884 = vmatprep.subr.mxu0 0.0
        %885 = vmatpush1.msra.mxu0 0.0
        %886 = vmatprep.subr.mxu0 0.0
        %887 = vmatpush1.msra.mxu0 0.0
        %888 = vmatprep.subr.mxu0 0.0
        %889 = vmatpush1.msra.mxu0 0.0
        %890 = vmatprep.subr.mxu0 0.0
        %891 = vmatpush1.msra.mxu0 0.0
        %892 = vmatprep.subr.mxu0 0.0
        %893 = vmatpush1.msra.mxu0 0.0
        %894 = vmatprep.subr.mxu0 0.0
        %895 = vmatpush1.msra.mxu0 0.0
        %896 = vmatprep.subr.mxu0 0.0
        %897 = vmatpush1.msra.mxu0 0.0
        %898 = vmatprep.subr.mxu0 0.0
        %899 = vmatpush1.msra.mxu0 0.0
        %900 = vmatprep.subr.mxu0 0.0
        %901 = vmatpush1.msra.mxu0 0.0
        %902 = vmatprep.subr.mxu0 0.0
        %903 = vmatpush1.msra.mxu0 0.0
        %904 = vmatprep.subr.mxu0 0.0
        %905 = vmatpush1.msra.mxu0 0.0
        %906 = vmatprep.subr.mxu0 0.0
        %907 = vmatpush1.msra.mxu0 0.0
        %908 = vmatprep.subr.mxu0 0.0
        %909 = vmatpush1.msra.mxu0 0.0
        %910 = vmatprep.subr.mxu0 0.0
        %911 = vmatpush1.msra.mxu0 0.0
        %912 = vmatprep.subr.mxu0 0.0
        %913 = vmatpush1.msra.mxu0 0.0
        %914 = vmatprep.subr.mxu0 0.0
        %915 = vmatpush1.msra.mxu0 0.0
        %916 = vmatprep.subr.mxu0 0.0
        %917 = vmatpush1.msra.mxu0 0.0
        %918 = vmatprep.subr.mxu0 0.0
        %919 = vmatpush1.msra.mxu0 0.0
        %920 = vmatprep.subr.mxu0 0.0
        %921 = vmatpush1.msra.mxu0 0.0
        %922 = vmatprep.subr.mxu0 0.0
        %923 = vmatpush1.msra.mxu0 0.0
        %924 = vmatprep.subr.mxu0 0.0
        %925 = vmatpush1.msra.mxu0 0.0
        %926 = vmatprep.subr.mxu0 0.0
        %927 = vmatpush1.msra.mxu0 0.0
        %928 = vmatprep.subr.mxu0 0.0
        %929 = vmatpush1.msra.mxu0 0.0
        %930 = vmatprep.subr.mxu0 0.0
        %931 = vmatpush1.msra.mxu0 0.0
        %932 = vmatprep.subr.mxu0 0.0
        %933 = vmatpush1.msra.mxu0 0.0
        %934 = vmatprep.subr.mxu0 0.0
        %935 = vmatpush1.msra.mxu0 0.0
        %936 = vmatprep.subr.mxu0 0.0
        %937 = vmatpush1.msra.mxu0 0.0
        %938 = vmatprep.mubr.f32.mxu0 0.0
        %939 = vmatmul.mubr.f32.gmra.mrb[0].mxu0 %v866
        %v940 = vpop.f32.mrb[0].mxu0
        %v941 = vadd.f32 %v862, %v940
        %v942 = vpop.f32.mrb[0].mxu0
        %v943 = vadd.f32 %v862, %v942
        %944 = vdwg.mxu0
        %v945 = vmax.f32 %v941, 0.0
        %v946 = vmax.f32 %v943, 0.0
        %v947 = vld [vmem:[%s569] sm:$0xff]
        %948 = vrot.lane.b32.xlu0 %v945, 17
        %v949 = vpop.permute.xlu0 %948
        %950 = vrot.lane.b32.xlu0 %v946, 17
        %v951 = vpop.permute.xlu0 %950
        %v952 = vsel %vm654, %v949, %v951
        %v953 = vsel %vm654, %v951, %v949
        %v954 = vmul.f32 %v953, %v662
        %v955 = vmul.f32 %v952, %v666
        %956 = vrot.lane.b32.xlu0 %v945, 16
        %v957 = vpop.permute.xlu0 %956
        %958 = vrot.lane.b32.xlu0 %v946, 16
        %v959 = vpop.permute.xlu0 %958
        %v960 = vsel %vm675, %v957, %v959
        %v961 = vsel %vm675, %v959, %v957
        %v962 = vmul.f32 %v961, %v684
        %v963 = vmul.f32 %v960, %v688
        %964 = vrot.lane.b32.xlu0 %v945, 15
        %v965 = vpop.permute.xlu0 %964
        %966 = vrot.lane.b32.xlu0 %v946, 15
        %v967 = vpop.permute.xlu0 %966
        %v968 = vsel %vm697, %v965, %v967
        %v969 = vsel %vm697, %v967, %v965
        %v970 = vmul.f32 %v969, %v706
        %v971 = vmul.f32 %v968, %v710
        %972 = vrot.lane.b32.xlu0 %v945, 1
        %v973 = vpop.permute.xlu0 %972
        %974 = vrot.lane.b32.xlu0 %v946, 1
        %v975 = vpop.permute.xlu0 %974
        %v976 = vsel %vm719, %v973, %v975
        %v977 = vsel %vm719, %v975, %v973
        %v978 = vmul.f32 %v977, %v728
        %v979 = vmul.f32 %v976, %v732
        %980 = vrot.lane.b32.xlu0 %v945, 127
        %v981 = vpop.permute.xlu0 %980
        %982 = vrot.lane.b32.xlu0 %v946, 127
        %v983 = vpop.permute.xlu0 %982
        %v984 = vsel %vm741, %v981, %v983
        %v985 = vsel %vm741, %v983, %v981
        %v986 = vmul.f32 %v984, %v750
        %v987 = vmul.f32 %v985, %v754
        %988 = vrot.lane.b32.xlu0 %v945, 113
        %v989 = vpop.permute.xlu0 %988
        %990 = vrot.lane.b32.xlu0 %v946, 113
        %v991 = vpop.permute.xlu0 %990
        %v992 = vsel %vm763, %v989, %v991
        %v993 = vsel %vm763, %v991, %v989
        %v994 = vmul.f32 %v992, %v772
        %v995 = vmul.f32 %v993, %v776
        %996 = vrot.lane.b32.xlu0 %v945, 112
        %v997 = vpop.permute.xlu0 %996
        %998 = vrot.lane.b32.xlu0 %v946, 112
        %v999 = vpop.permute.xlu0 %998
        %v1000 = vsel %vm785, %v997, %v999
        %v1001 = vsel %vm785, %v999, %v997
        %v1002 = vmul.f32 %v1000, %v794
        %v1003 = vmul.f32 %v1001, %v798
        %1004 = vrot.lane.b32.xlu0 %v945, 111
        %v1005 = vpop.permute.xlu0 %1004
        %1006 = vrot.lane.b32.xlu0 %v946, 111
        %v1007 = vpop.permute.xlu0 %1006
        %v1008 = vsel %vm807, %v1005, %v1007
        %v1009 = vsel %vm807, %v1007, %v1005
        %v1010 = vmul.f32 %v1008, %v816
        %v1011 = vmul.f32 %v1009, %v820
        %v1014 = vrot.slane %v962, 4
        %v1015 = vrot.slane %v963, 4
        %v1020 = vrot.slane %v978, 4
        %v1021 = vrot.slane %v979, 4
        %v1026 = vrot.slane %v986, 4
        %v1027 = vrot.slane %v987, 4
        %v1032 = vrot.slane %v1002, 4
        %v1033 = vrot.slane %v1003, 4
        %v1036 = vsel %vm849, %v954, %v1014
        %v1037 = vsel %vm849, %v955, %v1015
        %v1038 = vsel %vm849, %v970, %v1020
        %v1039 = vsel %vm849, %v971, %v1021
        %v1040 = vsel %vm849, %v945, %v1026
        %v1041 = vsel %vm849, %v946, %v1027
        %v1042 = vsel %vm849, %v994, %v1032
        %v1043 = vsel %vm849, %v995, %v1033
        %v1044 = vld [vmem:[%s573] sm:$0xff]
        %1046 = vset.pattern.permute.xlu0 0
        %1047 = vperm.xlu0 %1046, %v1044
        %v1048 = vpop.permute.xlu0 %1047
        %v1051 = vsel %vm864, %v947, 0
        %v1054 = vsel %vm849, %v1010, 0
        %v1057 = vsel %vm849, %v1011, 0
        %1059 = vmatprep.subr.mxu0 %v1037
        %1060 = vmatpush1.msra.mxu0 %v1036
        %1061 = vmatprep.subr.mxu0 %v1039
        %1062 = vmatpush1.msra.mxu0 %v1038
        %1063 = vmatprep.subr.mxu0 %v1041
        %1064 = vmatpush1.msra.mxu0 %v1040
        %1065 = vmatprep.subr.mxu0 %v1043
        %1066 = vmatpush1.msra.mxu0 %v1042
        %1067 = vmatprep.subr.mxu0 %v1057
        %1068 = vmatpush1.msra.mxu0 %v1054
        %1069 = vmatprep.subr.mxu0 0.0
        %1070 = vmatpush1.msra.mxu0 0.0
        %1071 = vmatprep.subr.mxu0 0.0
        %1072 = vmatpush1.msra.mxu0 0.0
        %1073 = vmatprep.subr.mxu0 0.0
        %1074 = vmatpush1.msra.mxu0 0.0
        %1075 = vmatprep.subr.mxu0 0.0
        %1076 = vmatpush1.msra.mxu0 0.0
        %1077 = vmatprep.subr.mxu0 0.0
        %1078 = vmatpush1.msra.mxu0 0.0
        %1079 = vmatprep.subr.mxu0 0.0
        %1080 = vmatpush1.msra.mxu0 0.0
        %1081 = vmatprep.subr.mxu0 0.0
        %1082 = vmatpush1.msra.mxu0 0.0
        %1083 = vmatprep.subr.mxu0 0.0
        %1084 = vmatpush1.msra.mxu0 0.0
        %1085 = vmatprep.subr.mxu0 0.0
        %1086 = vmatpush1.msra.mxu0 0.0
        %1087 = vmatprep.subr.mxu0 0.0
        %1088 = vmatpush1.msra.mxu0 0.0
        %1089 = vmatprep.subr.mxu0 0.0
        %1090 = vmatpush1.msra.mxu0 0.0
        %1091 = vmatprep.subr.mxu0 0.0
        %1092 = vmatpush1.msra.mxu0 0.0
        %1093 = vmatprep.subr.mxu0 0.0
        %1094 = vmatpush1.msra.mxu0 0.0
        %1095 = vmatprep.subr.mxu0 0.0
        %1096 = vmatpush1.msra.mxu0 0.0
        %1097 = vmatprep.subr.mxu0 0.0
        %1098 = vmatpush1.msra.mxu0 0.0
        %1099 = vmatprep.subr.mxu0 0.0
        %1100 = vmatpush1.msra.mxu0 0.0
        %1101 = vmatprep.subr.mxu0 0.0
        %1102 = vmatpush1.msra.mxu0 0.0
        %1103 = vmatprep.subr.mxu0 0.0
        %1104 = vmatpush1.msra.mxu0 0.0
        %1105 = vmatprep.subr.mxu0 0.0
        %1106 = vmatpush1.msra.mxu0 0.0
        %1107 = vmatprep.subr.mxu0 0.0
        %1108 = vmatpush1.msra.mxu0 0.0
        %1109 = vmatprep.subr.mxu0 0.0
        %1110 = vmatpush1.msra.mxu0 0.0
        %1111 = vmatprep.subr.mxu0 0.0
        %1112 = vmatpush1.msra.mxu0 0.0
        %1113 = vmatprep.subr.mxu0 0.0
        %1114 = vmatpush1.msra.mxu0 0.0
        %1115 = vmatprep.subr.mxu0 0.0
        %1116 = vmatpush1.msra.mxu0 0.0
        %1117 = vmatprep.subr.mxu0 0.0
        %1118 = vmatpush1.msra.mxu0 0.0
        %1119 = vmatprep.subr.mxu0 0.0
        %1120 = vmatpush1.msra.mxu0 0.0
        %1121 = vmatprep.subr.mxu0 0.0
        %1122 = vmatpush1.msra.mxu0 0.0
        %1123 = vmatprep.mubr.f32.mxu0 0.0
        %1124 = vmatmul.mubr.f32.gmra.mrb[0].mxu0 %v1051
        %v1125 = vpop.f32.mrb[0].mxu0
        %v1126 = vadd.f32 %v1048, %v1125
        %v1127 = vpop.f32.mrb[0].mxu0
        %v1128 = vadd.f32 %v1048, %v1127
        %1129 = vdwg.mxu0
        %v1130 = vtanh.pop %v1126
        %v1131 = vtanh.pop %v1128
        %v1132 = vmul.f32 %v1130, 2.0
        %v1133 = vmul.f32 %v1131, 2.0
        %v1134 = vmul.f32 %v1132, 1.442695
        %v1135 = vpow.pop %v1134
        %v1136 = vmul.f32 %v1133, 1.442695
        %v1137 = vpow.pop %v1136
        %v1140 = vrot.slane %v1135, 4
        %v1141 = vrot.slane %v1137, 4
        %v1144 = vmul.f32 %v645, %v1140
        %v1145 = vmul.f32 %v646, %v1141
        %v1146 = vadd.f32 %v1144, %v1126
        %v1147 = vadd.f32 %v1145, %v1128
        %v1148 = vld [vmem:[#allocation3] sm:$0x1]
        %v1149 = vsel %vm849, %v1132, 0.0
        %v1150 = vsel %vm849, %v1133, 0.0
        %v1151 = vadd.f32 %v1149, %v1150
        %1152 = vadd.xlane.f32.xlu0 %v1151
        %v1153 = vpop.xlane.xlu0 %1152
        %v1154 = vrot.slane %v1153, 4
        %v1155 = vadd.f32 %v1153, %v1154
        %v1156 = vrot.slane %v1155, 2
        %v1157 = vadd.f32 %v1155, %v1156
        %v1158 = vrot.slane %v1157, 1
        %v1159 = vadd.f32 %v1157, %v1158
        %s1160 = vtos %v1159
        %v1161 = vstv %s1160
        %v1162 = vadd.f32 %v1148, %v1161
        %vm1163 = vcmask 0
        %1164 = vst.msk [vmem:[#allocation3] sm:$0x1] %vm1163, %v1162
        %v1165 = vld [vmem:[%s577] sm:$0xff]
        %v1166 = vld [vmem:[%s581] sm:$0xff]
        %v1169 = vrot.slane %v1146, 4
        %v1170 = vrot.slane %v1147, 4
        %vm1171 = vcmask 31744
        %v1173 = vsel %vm1171, %v1166, 0
        %v1175 = vsel %vm849, %v1169, 0
        %v1177 = vsel %vm849, %v1170, 0
        %1179 = vmatprep.subr.mxu0 %v1177
        %1180 = vmatpush1.msra.mxu0 %v1175
        %1181 = vmatprep.subr.mxu0 0.0
        %1182 = vmatpush1.msra.mxu0 0.0
        %1183 = vmatprep.subr.mxu0 0.0
        %1184 = vmatpush1.msra.mxu0 0.0
        %1185 = vmatprep.subr.mxu0 0.0
        %1186 = vmatpush1.msra.mxu0 0.0
        %1187 = vmatprep.subr.mxu0 0.0
        %1188 = vmatpush1.msra.mxu0 0.0
        %1189 = vmatprep.subr.mxu0 0.0
        %1190 = vmatpush1.msra.mxu0 0.0
        %1191 = vmatprep.subr.mxu0 0.0
        %1192 = vmatpush1.msra.mxu0 0.0
        %1193 = vmatprep.subr.mxu0 0.0
        %1194 = vmatpush1.msra.mxu0 0.0
        %1195 = vmatprep.subr.mxu0 0.0
        %1196 = vmatpush1.msra.mxu0 0.0
        %1197 = vmatprep.subr.mxu0 0.0
        %1198 = vmatpush1.msra.mxu0 0.0
        %1199 = vmatprep.subr.mxu0 0.0
        %1200 = vmatpush1.msra.mxu0 0.0
        %1201 = vmatprep.subr.mxu0 0.0
        %1202 = vmatpush1.msra.mxu0 0.0
        %1203 = vmatprep.subr.mxu0 0.0
        %1204 = vmatpush1.msra.mxu0 0.0
        %1205 = vmatprep.subr.mxu0 0.0
        %1206 = vmatpush1.msra.mxu0 0.0
        %1207 = vmatprep.subr.mxu0 0.0
        %1208 = vmatpush1.msra.mxu0 0.0
        %1209 = vmatprep.subr.mxu0 0.0
        %1210 = vmatpush1.msra.mxu0 0.0
        %1211 = vmatprep.subr.mxu0 0.0
        %1212 = vmatpush1.msra.mxu0 0.0
        %1213 = vmatprep.subr.mxu0 0.0
        %1214 = vmatpush1.msra.mxu0 0.0
        %1215 = vmatprep.subr.mxu0 0.0
        %1216 = vmatpush1.msra.mxu0 0.0
        %1217 = vmatprep.subr.mxu0 0.0
        %1218 = vmatpush1.msra.mxu0 0.0
        %1219 = vmatprep.subr.mxu0 0.0
        %1220 = vmatpush1.msra.mxu0 0.0
        %1221 = vmatprep.subr.mxu0 0.0
        %1222 = vmatpush1.msra.mxu0 0.0
        %1223 = vmatprep.subr.mxu0 0.0
        %1224 = vmatpush1.msra.mxu0 0.0
        %1225 = vmatprep.subr.mxu0 0.0
        %1226 = vmatpush1.msra.mxu0 0.0
        %1227 = vmatprep.subr.mxu0 0.0
        %1228 = vmatpush1.msra.mxu0 0.0
        %1229 = vmatprep.subr.mxu0 0.0
        %1230 = vmatpush1.msra.mxu0 0.0
        %1231 = vmatprep.subr.mxu0 0.0
        %1232 = vmatpush1.msra.mxu0 0.0
        %1233 = vmatprep.subr.mxu0 0.0
        %1234 = vmatpush1.msra.mxu0 0.0
        %1235 = vmatprep.subr.mxu0 0.0
        %1236 = vmatpush1.msra.mxu0 0.0
        %1237 = vmatprep.subr.mxu0 0.0
        %1238 = vmatpush1.msra.mxu0 0.0
        %1239 = vmatprep.subr.mxu0 0.0
        %1240 = vmatpush1.msra.mxu0 0.0
        %1241 = vmatprep.subr.mxu0 0.0
        %1242 = vmatpush1.msra.mxu0 0.0
        %1243 = vmatprep.mubr.f32.mxu0 0.0
        %1244 = vmatmul.mubr.f32.gmra.mrb[0].mxu0 %v1173
        %v1245 = vpop.f32.mrb[0].mxu0
        %v1246 = vadd.f32 0.0, %v1245
        %v1247 = vpop.f32.mrb[0].mxu0
        %v1248 = vadd.f32 0.0, %v1247
        %1249 = vdwg.mxu0
        %v1251 = vsel %vm1171, %v1165, 0
        %v1254 = vsel %vm849, %v645, 0
        %v1257 = vsel %vm849, %v646, 0
        %1259 = vmatprep.subr.mxu0 %v1257
        %1260 = vmatpush1.msra.mxu0 %v1254
        %1261 = vmatprep.subr.mxu0 0.0
        %1262 = vmatpush1.msra.mxu0 0.0
        %1263 = vmatprep.subr.mxu0 0.0
        %1264 = vmatpush1.msra.mxu0 0.0
        %1265 = vmatprep.subr.mxu0 0.0
        %1266 = vmatpush1.msra.mxu0 0.0
        %1267 = vmatprep.subr.mxu0 0.0
        %1268 = vmatpush1.msra.mxu0 0.0
        %1269 = vmatprep.subr.mxu0 0.0
        %1270 = vmatpush1.msra.mxu0 0.0
        %1271 = vmatprep.subr.mxu0 0.0
        %1272 = vmatpush1.msra.mxu0 0.0
        %1273 = vmatprep.subr.mxu0 0.0
        %1274 = vmatpush1.msra.mxu0 0.0
        %1275 = vmatprep.subr.mxu0 0.0
        %1276 = vmatpush1.msra.mxu0 0.0
        %1277 = vmatprep.subr.mxu0 0.0
        %1278 = vmatpush1.msra.mxu0 0.0
        %1279 = vmatprep.subr.mxu0 0.0
        %1280 = vmatpush1.msra.mxu0 0.0
        %1281 = vmatprep.subr.mxu0 0.0
        %1282 = vmatpush1.msra.mxu0 0.0
        %1283 = vmatprep.subr.mxu0 0.0
        %1284 = vmatpush1.msra.mxu0 0.0
        %1285 = vmatprep.subr.mxu0 0.0
        %1286 = vmatpush1.msra.mxu0 0.0
        %1287 = vmatprep.subr.mxu0 0.0
        %1288 = vmatpush1.msra.mxu0 0.0
        %1289 = vmatprep.subr.mxu0 0.0
        %1290 = vmatpush1.msra.mxu0 0.0
        %1291 = vmatprep.subr.mxu0 0.0
        %1292 = vmatpush1.msra.mxu0 0.0
        %1293 = vmatprep.subr.mxu0 0.0
        %1294 = vmatpush1.msra.mxu0 0.0
        %1295 = vmatprep.subr.mxu0 0.0
        %1296 = vmatpush1.msra.mxu0 0.0
        %1297 = vmatprep.subr.mxu0 0.0
        %1298 = vmatpush1.msra.mxu0 0.0
        %1299 = vmatprep.subr.mxu0 0.0
        %1300 = vmatpush1.msra.mxu0 0.0
        %1301 = vmatprep.subr.mxu0 0.0
        %1302 = vmatpush1.msra.mxu0 0.0
        %1303 = vmatprep.subr.mxu0 0.0
        %1304 = vmatpush1.msra.mxu0 0.0
        %1305 = vmatprep.subr.mxu0 0.0
        %1306 = vmatpush1.msra.mxu0 0.0
        %1307 = vmatprep.subr.mxu0 0.0
        %1308 = vmatpush1.msra.mxu0 0.0
        %1309 = vmatprep.subr.mxu0 0.0
        %1310 = vmatpush1.msra.mxu0 0.0
        %1311 = vmatprep.subr.mxu0 0.0
        %1312 = vmatpush1.msra.mxu0 0.0
        %1313 = vmatprep.subr.mxu0 0.0
        %1314 = vmatpush1.msra.mxu0 0.0
        %1315 = vmatprep.subr.mxu0 0.0
        %1316 = vmatpush1.msra.mxu0 0.0
        %1317 = vmatprep.subr.mxu0 0.0
        %1318 = vmatpush1.msra.mxu0 0.0
        %1319 = vmatprep.subr.mxu0 0.0
        %1320 = vmatpush1.msra.mxu0 0.0
        %1321 = vmatprep.subr.mxu0 0.0
        %1322 = vmatpush1.msra.mxu0 0.0
        %1323 = vmatprep.mubr.f32.mxu0 0.0
        %1324 = vmatmul.mubr.f32.gmra.mrb[0].mxu0 %v1251
        %v1325 = vpop.f32.mrb[0].mxu0
        %v1326 = vadd.f32 %v1246, %v1325
        %v1327 = vpop.f32.mrb[0].mxu0
        %v1328 = vadd.f32 %v1248, %v1327
        %1329 = vdwg.mxu0
        %v1330 = vld [vmem:[%s585] sm:$0xff]
        %1332 = vset.pattern.permute.xlu0 0
        %1333 = vperm.xlu0 %1332, %v1330
        %v1334 = vpop.permute.xlu0 %1333
        %v1336 = vadd.f32 %v1326, %v1334
        %v1337 = vadd.f32 %v1328, %v1334
        %1338 = vst [vmem:[#allocation2] sm:$0xff] %v1336
        %1339 = vst [vmem:[#allocation2 + $0x8] sm:$0xff] %v1337
        %p1340 = scmp.eq.s32.totalorder %s36, 3
        // Predicated region
        $region69: #{tpu_custom_call.1} parent=63 // pred_check
          %p1341 = pneg %p1340
        $region70: #{tpu_custom_call.1} parent=63 // pred_check_branch
          %1343 = sbr.rel (%p1341) target = $region72
        $region71: #{tpu_custom_call.1} parent=63 // pred_region
          %v1344 = vld [vmem:[#allocation2] sm:$0xff]
          %v1345 = vld [vmem:[#allocation2 + $0x8] sm:$0xff]
          %1346 = vst [vmem:[%s540] sm:$0xff] %v1344
          %1347 = vst [vmem:[%s540 + $0x8] sm:$0xff] %v1345
          %v1348 = vmul.f32 %v1344, %v1344
          %v1349 = vmul.f32 %v1345, %v1345
          %v1350 = vadd.f32 %v1348, %v1349
          %1351 = vadd.xlane.f32.xlu0 %v1350
          %v1352 = vpop.xlane.xlu0 %1351
          %v1353 = vrot.slane %v1352, 4
          %v1354 = vadd.f32 %v1352, %v1353
          %v1355 = vrot.slane %v1354, 2
          %v1356 = vadd.f32 %v1354, %v1355
          %v1357 = vrot.slane %v1356, 1
          %v1358 = vadd.f32 %v1356, %v1357
          %s1359 = vtos %v1358
          %s1360 = smul.f32 %s1359, 0.5
          %v1361 = vld [vmem:[#allocation3] sm:$0x1]
          %s1362 = vtos %v1361
          %s1363 = ssub.f32 %s1360, %s1362
          %v1364 = vstv %s1363
          %1365 = vst.msk [vmem:[%s588] sm:$0x1] %vm1163, %v1364
          %v1366 = vrot.slane %v1348, 4
          %v1367 = vadd.f32 %v1348, %v1366
          %v1368 = vrot.slane %v1367, 2
          %v1369 = vadd.f32 %v1367, %v1368
          %v1370 = vrot.slane %v1369, 1
          %v1371 = vadd.f32 %v1369, %v1370
          %v1372 = vrot.slane %v1349, 4
          %v1373 = vadd.f32 %v1349, %v1372
          %v1374 = vrot.slane %v1373, 2
          %v1375 = vadd.f32 %v1373, %v1374
          %v1376 = vrot.slane %v1375, 1
          %v1377 = vadd.f32 %v1375, %v1376
          %v1378 = vrcp.pop 8.0
          %v1379 = vmul.f32 %v1371, %v1378
          %v1380 = vmul.f32 %v1377, %v1378
          %v1381 = vmul.f32 %v1379, -0.5
          %v1382 = vmul.f32 %v1380, -0.5
          %v1383 = vmul.f32 %v1381, 1.442695
          %v1384 = vpow.pop %v1383
          %v1385 = vmul.f32 %v1382, 1.442695
          %v1386 = vpow.pop %v1385
          %v1387 = vsub.f32 0.0, %v1384
          %v1388 = vsub.f32 0.0, %v1386
          %v1391 = vcombine.low %v1387, %v1388
          %v1393 = vunpack.c.l.s4 1966171168
          %v1394 = vunpack.c.0.s8 %v1393
          %v1395 = vlaneseq
          %v1396 = vshrl.u32 %v1395, 7
          %v1397 = vsub.s32 %v1394, %v1396
          %v1398 = vrot.slane %v1391, %v1397
          %v1400 = vunpack.c.l.s4 1966171168
          %v1401 = vunpack.c.0.s8 %v1400
          %v1402 = vlaneseq
          %v1403 = vshrl.u32 %v1402, 7
          %v1404 = vsub.s32 %v1401, %v1403
          %v1405 = vrot.slane %v1398, %v1404
          %v1407 = vlaneseq
          %vm1408 = vcmp.ge.s32.totalorder %v1407, 0
          %vm1409 = vcmp.lt.s32.totalorder %v1407, 256
          %vm1410 = vmand %vm1408, %vm1409
          %1411 = vst.msk [vmem:[%s552] sm:$0x3] %vm1410, %v1405
        $region72: #{tpu_custom_call.1} parent=63 // pred_fallthru
          _
        %s1412 = sand.u32 %s322, 1
        %s1413 = scalar_lea.sflag [#allocation5], %s1412
        %s1414 = sand.u32 %s322, 1
        %s1415 = smul.addr %s1414, 16
        %s1416 = scalar_lea.vmem [#allocation4], %s1415
        %p1417 = scmp.lt.s32.totalorder %s35, 1
        %s1418 = scalar_select %p1417, %s35, 1
        %s1419 = scalar_lea.vmem %s12, %s1418
        %s1420 = sand.u32 %s374, 1
        %s1421 = scalar_lea.sflag [#allocation7], %s1420
        %s1422 = sand.u32 %s374, 1
        %s1423 = smul.addr %s1422, 2
        %s1424 = scalar_lea.vmem [#allocation6], %s1423
        // Predicated region
        $region73: #{tpu_custom_call.1} parent=63 // pred_check
          %p1425 = pneg %p332
        $region74: #{tpu_custom_call.1} parent=63 // pred_check_branch
          %1427 = sbr.rel (%p1425) target = $region76
        $region75: #{tpu_custom_call.1} parent=63 // pred_region
          %s1429 = ssub.s32 256, 256
          %1430 = vsyncadd %s1413, %s1429
          %s1431 = smul.addr %s35, 2
          %s1432 = smul.addr %s1431, 128
          %s1433 = scalar_lea.hbm %s11, %s1432
          %s1435 = sshll.u32 %s1416, 4
          %s1436 = int_to_ptr.vmem [resolvable:$true] %s1435
          %1438 = dma.vmem_to_hbm [thread:$0]  %s1436, 256, %s1433, %s1413
        $region76: #{tpu_custom_call.1} parent=63 // pred_fallthru
          _
        // Predicated region
        $region77: #{tpu_custom_call.1} parent=63 // pred_check
          %p1439 = pneg %p358
        $region78: #{tpu_custom_call.1} parent=63 // pred_check_branch
          %1441 = sbr.rel (%p1439) target = $region80
        $region79: #{tpu_custom_call.1} parent=63 // pred_region
          _
        $region80: #{tpu_custom_call.1} parent=63 // pred_fallthru
          _
        // Predicated region
        $region81: #{tpu_custom_call.1} parent=63 // pred_check
          %p1442 = pneg %p384
        $region82: #{tpu_custom_call.1} parent=63 // pred_check_branch
          %1444 = sbr.rel (%p1442) target = $region84
        $region83: #{tpu_custom_call.1} parent=63 // pred_region
          %s1446 = ssub.s32 32, 32
          %1447 = vsyncadd %s1421, %s1446
          %s1448 = smul.addr %s35, 2
          %s1449 = smul.addr %s1448, 16
          %s1450 = scalar_lea.hbm %s13, %s1449
          %s1452 = sshll.u32 %s1424, 4
          %s1453 = int_to_ptr.vmem [resolvable:$true] %s1452
          %1455 = dma.vmem_to_hbm [thread:$0]  %s1453, 32, %s1450, %s1421
        $region84: #{tpu_custom_call.1} parent=63 // pred_fallthru
          _
      $region64: #{tpu_custom_call.1} parent=5 // pred_fallthru
        _
      %p1456 = scmp.le.s32.totalorder 2, %s26
      // Predicated region
      $region85: #{tpu_custom_call.1} parent=5 // pred_check
        %p1457 = pneg %p1456
      $region86: #{tpu_custom_call.1} parent=5 // pred_check_branch
        %1459 = sbr.rel (%p1457) target = $region88
      $region87: #{tpu_custom_call.1} parent=5 // pred_region
        %s1460 = ssub.s32 %s26, 2
        // Predicated region
        $region89: #{tpu_custom_call.1} parent=87 // pred_check
          %p1461 = pneg %p338
        $region90: #{tpu_custom_call.1} parent=87 // pred_check_branch
          %1463 = sbr.rel (%p1461) target = $region92
        $region91: #{tpu_custom_call.1} parent=87 // pred_region
          %s1464 = sand.u32 %s323, 1
          %s1465 = scalar_lea.sflag [#allocation5], %s1464
          %s1466 = sand.u32 %s323, 1
          %s1467 = smul.addr %s1466, 16
          %s1468 = scalar_lea.vmem [#allocation4], %s1467
          %1469 = dma.done %s1465, 256
        $region92: #{tpu_custom_call.1} parent=87 // pred_fallthru
          _
        // Predicated region
        $region93: #{tpu_custom_call.1} parent=87 // pred_check
          %p1470 = pneg %p364
        $region94: #{tpu_custom_call.1} parent=87 // pred_check_branch
          %1472 = sbr.rel (%p1470) target = $region96
        $region95: #{tpu_custom_call.1} parent=87 // pred_region
          %p1473 = scmp.lt.s32.totalorder %s37, 1
          %s1474 = scalar_select %p1473, %s37, 1
          %s1475 = scalar_lea.vmem %s12, %s1474
        $region96: #{tpu_custom_call.1} parent=87 // pred_fallthru
          _
        // Predicated region
        $region97: #{tpu_custom_call.1} parent=87 // pred_check
          %p1476 = pneg %p390
        $region98: #{tpu_custom_call.1} parent=87 // pred_check_branch
          %1478 = sbr.rel (%p1476) target = $region100
        $region99: #{tpu_custom_call.1} parent=87 // pred_region
          %s1479 = sand.u32 %s375, 1
          %s1480 = scalar_lea.sflag [#allocation7], %s1479
          %s1481 = sand.u32 %s375, 1
          %s1482 = smul.addr %s1481, 2
          %s1483 = scalar_lea.vmem [#allocation6], %s1482
          %1484 = dma.done %s1480, 32
        $region100: #{tpu_custom_call.1} parent=87 // pred_fallthru
          _
      $region88: #{tpu_custom_call.1} parent=5 // pred_fallthru
        _
    $region6: #{tpu_custom_call.1} parent=1 // loop_footer
      %s30 = sadd.s32 1, %s26
    $region7: #{tpu_custom_call.1} parent=1 // loop_footer_branch
      %25 = sbr.rel target = $region3
    $region8: #{tpu_custom_call.1} parent=1 // loop_exit
      _
    %1485 = vsyncpa [#allocation5], 1
    %s1486 = scalar_lea.sflag [#allocation5], 1
    %1487 = vsyncpa %s1486, 1
    %1488 = vsyncpa [#allocation7], 1
    %s1489 = scalar_lea.sflag [#allocation7], 1
    %1490 = vsyncpa %s1489, 1

</llo_original>
